<compile_context>
chip_gen: v7x
topology: tpu7x:2x2x1
jax: 0.10.0
libtpu: 0.0.40
codegen_flags: <defaults>
</compile_context>

<pallas_src>
from functools import partial

import jax
import jax.numpy as jnp
from jax import lax
from jax.experimental import pallas as pl
from jax.experimental.pallas import tpu as pltpu  # noqa: F401

# ---- synthetic "base model" dims (small, VMEM-resident) --------------------
B, S, H = 2, 8, 32          # batch, seq, hidden_size
NUM_HEADS, HEAD_DIM = 2, 16
FFN = 64
VOCAB = 64
NUM_CLASSES = 2
LN_EPS = 1e-5

# mask bias added in f32 (scores are always accumulated in f32)
MASK_VALUE = -0.7 * float(jnp.finfo(jnp.float32).max)

# rows inside the packed (10, 3H) f32 vector slab
(ROW_BQKV, ROW_BO, ROW_LN1G, ROW_LN1B,
 ROW_B1, ROW_B2, ROW_LN2G, ROW_LN2B) = range(8)
ROW_CLS0 = 8                      # rows 8..9: classifier [W[c,:H] | w_ppl[c] | b[c] | 0]
N_VEC_ROWS = ROW_CLS0 + NUM_CLASSES

# lanes inside the packed (B*S, 128) f32 aux slab
COL_IDS = 0                       # every row r: token id of flattened row r (as float)
COL_MASK = 8                      # rows 0..B-1, lanes 8..8+S-1: attention mask
COL_PPL = 16                      # rows 0..B-1, lane 16: ppl feature
COL_ONEHOT = 24                   # rows 0..B-1, lanes 24..24+C-1: one-hot labels
AUX_LANES = 128


# ---------------------------------------------------------------------------
# Traced helpers (all elementwise math kept in f32)
# ---------------------------------------------------------------------------
def _layernorm(x, g, b):
    mu = jnp.mean(x, axis=-1, keepdims=True)
    var = jnp.mean(jnp.square(x - mu), axis=-1, keepdims=True)
    return (x - mu) * lax.rsqrt(var + LN_EPS) * g + b


def _gelu(x):
    # TODO(synk): tanh-approximate GELU; PyTorch nn.GELU default is exact erf.
    c = 0.7978845608028654  # sqrt(2/pi)
    return 0.5 * x * (1.0 + jnp.tanh(c * (x + 0.044715 * x * x * x)))


# ---------------------------------------------------------------------------
# Single fused kernel (gridless): embedding gather + encoder layer + fusion
# head (+ optional CE loss).  `compute_loss` is a static Python flag.
# ---------------------------------------------------------------------------
def model_kernel(aux_ref, tok_ref, pos_ref, wattn_ref, w1_ref, w2_ref,
                 vecs_ref, out_ref, *, compute_loss):
    aux = aux_ref[...]                       # (B*S, 128) f32 packed aux slab
    vecs = vecs_ref[...]                     # (10, 3H) f32 packed biases/LN/classifier
    w_attn = wattn_ref[...]                  # (H, 4H) bf16: [wq*scale | wk | wv | wo]

    # ---- in-kernel embedding gather as a one-hot MXU matmul ----------------
    ids_col = aux[:, COL_IDS:COL_IDS + 1]    # (B*S, 1) token ids as exact floats
    vocab_iota = lax.broadcasted_iota(jnp.int32, (B * S, VOCAB), 1).astype(jnp.float32)
    tok_onehot = jnp.where(ids_col == vocab_iota, 1.0, 0.0).astype(jnp.bfloat16)
    pos = pos_ref[...]                       # (S, H) f32
    x = (jnp.dot(tok_onehot, tok_ref[...], preferred_element_type=jnp.float32)
         + jnp.concatenate([pos] * B, axis=0))                       # (B*S, H) f32

    # ---- fused QKV projection: one MXU push ---------------------------------
    qkv = (jnp.dot(x.astype(jnp.bfloat16), w_attn[:, :3 * H],
                   preferred_element_type=jnp.float32)
           + vecs[ROW_BQKV:ROW_BQKV + 1, :])                         # (B*S, 3H) f32
    q = qkv[:, :H]
    k = qkv[:, H:2 * H]
    v = qkv[:, 2 * H:3 * H]

    # ---- key mask (hoisted once above the loops) -----------------------------
    mask_all = aux[0:B, COL_MASK:COL_MASK + S]                       # (B, S)
    neg_all = (1.0 - mask_all) * MASK_VALUE                          # (B, S) f32

    # ---- attention: per-(batch, head) contexts stay in registers ------------
    # (1/sqrt(HEAD_DIM) already folded into the Wq columns of w_attn)
    batch_ctx = []
    for b in range(B):                        # static loops, static slices
        rs = slice(b * S, (b + 1) * S)
        neg = neg_all[b:b + 1, :]                                    # (1, S)
        head_ctx = []
        for h in range(NUM_HEADS):
            cs = slice(h * HEAD_DIM, (h + 1) * HEAD_DIM)
            qh = q[rs, cs].astype(jnp.bfloat16)
            kh = k[rs, cs].astype(jnp.bfloat16)
            vh = v[rs, cs].astype(jnp.bfloat16)
            # q @ k^T without an explicit transpose
            scores = lax.dot_general(qh, kh, (((1,), (1,)), ((), ())),
                                     preferred_element_type=jnp.float32) + neg
            scores = scores - jnp.max(scores, axis=-1, keepdims=True)
            p = jnp.exp(scores)
            denom = jnp.sum(p, axis=-1, keepdims=True)
            p = p * pl.reciprocal(denom, approx=True)                # EUP slot
            head_ctx.append(jnp.dot(p.astype(jnp.bfloat16), vh,
                                    preferred_element_type=jnp.float32))
        batch_ctx.append(jnp.concatenate(head_ctx, axis=1))          # (S, H)
    ctx = jnp.concatenate(batch_ctx, axis=0)                         # (B*S, H)

    # ---- single output projection over the whole context slab ---------------
    attn = (jnp.dot(ctx.astype(jnp.bfloat16), w_attn[:, 3 * H:],
                    preferred_element_type=jnp.float32)
            + vecs[ROW_BO:ROW_BO + 1, :H])

    h1 = _layernorm(x + attn,
                    vecs[ROW_LN1G:ROW_LN1G + 1, :H],
                    vecs[ROW_LN1B:ROW_LN1B + 1, :H])
    ffn_h = _gelu(jnp.dot(h1.astype(jnp.bfloat16), w1_ref[...],
                          preferred_element_type=jnp.float32)
                  + vecs[ROW_B1:ROW_B1 + 1, :FFN])
    ffn = (jnp.dot(ffn_h.astype(jnp.bfloat16), w2_ref[...],
                   preferred_element_type=jnp.float32)
           + vecs[ROW_B2:ROW_B2 + 1, :H])
    h2 = _layernorm(h1 + ffn,
                    vecs[ROW_LN2G:ROW_LN2G + 1, :H],
                    vecs[ROW_LN2B:ROW_LN2B + 1, :H])                 # (B*S, H)

    # ---- CLS rows: static slices + in-register sublane concat ---------------
    cls_emb = jnp.concatenate([h2[b * S:b * S + 1, :] for b in range(B)],
                              axis=0)                                # (B, H)

    # ---- fusion head: [cls | ppl | 1] against lane-dense classifier rows ----
    ppl_col = aux[0:B, COL_PPL:COL_PPL + 1]                          # (B, 1)
    fused = jnp.concatenate([cls_emb, ppl_col,
                             jnp.ones((B, 1), jnp.float32)], axis=1)  # (B, H+2)
    clsw = vecs[ROW_CLS0:ROW_CLS0 + NUM_CLASSES, :H + 2]             # (C, H+2)
    logits = lax.dot_general(fused, clsw, (((1,), (1,)), ((), ())),
                             preferred_element_type=jnp.float32)     # (B, C)

    # ---- merged lane-dense output slab (single unmasked store) --------------
    lane_pad = jnp.zeros((B, AUX_LANES - NUM_CLASSES), jnp.float32)
    rows = [jnp.concatenate([logits, lane_pad], axis=1)]             # (B, 128)
    if compute_loss:
        # CrossEntropyLoss(mean): mean_b(logsumexp(logits_b) - logits_b[label_b])
        onehot_lbl = aux[0:B, COL_ONEHOT:COL_ONEHOT + NUM_CLASSES]   # (B, C)
        m = jnp.max(logits, axis=-1, keepdims=True)
        lse = m + jnp.log(jnp.sum(jnp.exp(logits - m), axis=-1, keepdims=True))
        picked = jnp.sum(logits * onehot_lbl, axis=-1, keepdims=True)
        loss = jnp.mean(lse - picked, axis=0, keepdims=True)         # (1, 1)
        rows.append(jnp.concatenate(
            [loss, jnp.zeros((1, AUX_LANES - 1), jnp.float32)], axis=1))
    n_rows = sum(r.shape[0] for r in rows)
    rows.append(jnp.zeros((8 - n_rows, AUX_LANES), jnp.float32))
    out_ref[...] = jnp.concatenate(rows, axis=0)                     # (8, 128)


# ---------------------------------------------------------------------------
# Parameters (deterministic, synthetic) -- packed for the kernel.
# ---------------------------------------------------------------------------
def init_params(key):
    keys = jax.random.split(key, 10)
    scale = 0.02

    def rnd(k, shape):
        return jax.random.normal(k, shape, jnp.float32) * scale

    tok_emb = rnd(keys[0], (VOCAB, H))
    pos_emb = rnd(keys[1], (S, H))
    wq = rnd(keys[2], (H, H)) * (1.0 / (HEAD_DIM ** 0.5))   # attn scale folded in
    wk = rnd(keys[3], (H, H))
    wv = rnd(keys[4], (H, H))
    wo = rnd(keys[5], (H, H))
    w1 = rnd(keys[6], (H, FFN))
    w2 = rnd(keys[7], (FFN, H))

    # lane-dense packed attention weights: (H, 4H) = (32, 128)
    w_attn = jnp.concatenate([wq, wk, wv, wo], axis=1)

    zeros_h = jnp.zeros((H,), jnp.float32)
    ones_h = jnp.ones((H,), jnp.float32)

    def pad_row(vec):
        return jnp.pad(vec, (0, 3 * H - vec.shape[0]))

    # classifier = nn.Linear(H + 1, 2): weight (2, H+1), bias (2,),
    # packed lane-dense as rows [W[c, :H] | W[c, H] | b[c] | 0...]
    w_full = rnd(keys[8], (NUM_CLASSES, H + 1))
    b_full = rnd(keys[9], (NUM_CLASSES,))
    cls_rows = [pad_row(jnp.concatenate([w_full[c], b_full[c:c + 1]]))
                for c in range(NUM_CLASSES)]

    # all small vectors in one (10, 3H) slab -> a single tiny DMA
    vecs = jnp.stack([
        jnp.zeros((3 * H,), jnp.float32),            # ROW_BQKV: bq|bk|bv
        pad_row(zeros_h),                            # ROW_BO
        pad_row(ones_h),                             # ROW_LN1G
        pad_row(zeros_h),                            # ROW_LN1B
        pad_row(jnp.zeros((FFN,), jnp.float32)),     # ROW_B1
        pad_row(zeros_h),                            # ROW_B2
        pad_row(ones_h),                             # ROW_LN2G
        pad_row(zeros_h),                            # ROW_LN2B
    ] + cls_rows)                                    # ROW_CLS0..ROW_CLS0+C-1
    assert vecs.shape == (N_VEC_ROWS, 3 * H)

    return {
        'tok_emb': tok_emb.astype(jnp.bfloat16),     # bf16 MXU operands
        'pos_emb': pos_emb,                          # additive -> keep f32
        'w_attn': w_attn.astype(jnp.bfloat16),
        'w1': w1.astype(jnp.bfloat16),
        'w2': w2.astype(jnp.bfloat16),
        'vecs': vecs,
    }


# ---------------------------------------------------------------------------
# Forward wrapper.
# ---------------------------------------------------------------------------
def ppl_fusion_forward(params, input_ids, attention_mask, ppl, labels=None):
    # TODO(synk): the pretrained HF AutoModel is replaced by a synthetic
    # 1-layer encoder; its embedding gather is done in-kernel via one-hot MXU.
    ids_f = input_ids.reshape(B * S).astype(jnp.float32)
    mask = attention_mask.astype(jnp.float32).reshape(B, S)
    ppl_v = ppl.astype(jnp.float32).reshape(B)

    # pack all tiny inputs into one lane-dense aux slab -> one DMA
    aux = jnp.zeros((B * S, AUX_LANES), jnp.float32)
    aux = aux.at[:, COL_IDS].set(ids_f)
    aux = aux.at[:B, COL_MASK:COL_MASK + S].set(mask)
    aux = aux.at[:B, COL_PPL].set(ppl_v)

    compute_loss = labels is not None
    if compute_loss:
        onehot = jax.nn.one_hot(labels, NUM_CLASSES, dtype=jnp.float32)
        aux = aux.at[:B, COL_ONEHOT:COL_ONEHOT + NUM_CLASSES].set(onehot)

    out = pl.pallas_call(
        partial(model_kernel, compute_loss=compute_loss),
        out_shape=jax.ShapeDtypeStruct((8, AUX_LANES), jnp.float32),
    )(aux, params['tok_emb'], params['pos_emb'], params['w_attn'],
      params['w1'], params['w2'], params['vecs'])

    logits = out[:B, :NUM_CLASSES]
    loss = out[B, 0] if compute_loss else None
    return {'loss': loss, 'logits': logits}


if __name__ == "__main__":
    key = jax.random.PRNGKey(0)
    pkey, ikey, pplkey, lkey = jax.random.split(key, 4)
    params = init_params(pkey)

    input_ids = jax.random.randint(ikey, (B, S), 0, VOCAB, dtype=jnp.int32)
    attention_mask = jnp.ones((B, S), jnp.float32).at[1, S - 2:].set(0.0)
    ppl = jax.random.uniform(pplkey, (B,), jnp.float32, 1.0, 10.0)
    labels = jax.random.randint(lkey, (B,), 0, NUM_CLASSES, dtype=jnp.int32)

    out = ppl_fusion_forward(params, input_ids, attention_mask, ppl, labels)
    jax.block_until_ready((out['logits'], out['loss']))

    # inference path (no labels): separate compiled variant without loss work
    out_inf = ppl_fusion_forward(params, input_ids, attention_mask, ppl)
    jax.block_until_ready(out_inf['logits'])

    print("KERNEL_OK")
</pallas_src>

<mosaic_0001>
module attributes {stable_mosaic.version = 11 : i64} {
  func.func @model_kernel(%arg0: memref<16x128xf32, #tpu.memory_space<vmem>>, %arg1: memref<64x32xbf16, #tpu.memory_space<vmem>>, %arg2: memref<8x32xf32, #tpu.memory_space<vmem>>, %arg3: memref<32x128xbf16, #tpu.memory_space<vmem>>, %arg4: memref<32x64xbf16, #tpu.memory_space<vmem>>, %arg5: memref<64x32xbf16, #tpu.memory_space<vmem>>, %arg6: memref<10x96xf32, #tpu.memory_space<vmem>>, %arg7: memref<8x128xf32, #tpu.memory_space<vmem>>) attributes {dimension_semantics = [], scalar_prefetch = 0 : i64, scratch_operands = 0 : i64, tpu.core_type = #tpu.core_type<tc>} {
    %c0 = arith.constant 0 : index
    %c0_0 = arith.constant 0 : index
    %0 = vector.load %arg0[%c0, %c0_0] : memref<16x128xf32, #tpu.memory_space<vmem>>, vector<16x128xf32>
    %c0_1 = arith.constant 0 : index
    %c0_2 = arith.constant 0 : index
    %1 = vector.load %arg6[%c0_1, %c0_2] : memref<10x96xf32, #tpu.memory_space<vmem>>, vector<10x96xf32>
    %c0_3 = arith.constant 0 : index
    %c0_4 = arith.constant 0 : index
    %2 = vector.load %arg3[%c0_3, %c0_4] : memref<32x128xbf16, #tpu.memory_space<vmem>>, vector<32x128xbf16>
    %3 = vector.extract_strided_slice %0 {offsets = [0, 0], sizes = [16, 1], strides = [1, 1]} : vector<16x128xf32> to vector<16x1xf32>
    %4 = tpu.iota {dimensions = array<i32: 1>} : vector<16x64xi32>
    %5 = arith.sitofp %4 : vector<16x64xi32> to vector<16x64xf32>
    %6 = vector.broadcast %3 : vector<16x1xf32> to vector<16x64xf32>
    %7 = arith.cmpf oeq, %6, %5 : vector<16x64xf32>
    %cst = arith.constant 1.000000e+00 : f32
    %cst_5 = arith.constant 0.000000e+00 : f32
    %8 = vector.broadcast %cst : f32 to vector<16x64xf32>
    %9 = vector.broadcast %cst_5 : f32 to vector<16x64xf32>
    %10 = arith.select %7, %8, %9 : vector<16x64xi1>, vector<16x64xf32>
    %11 = arith.truncf %10 : vector<16x64xf32> to vector<16x64xbf16>
    %c0_6 = arith.constant 0 : index
    %c0_7 = arith.constant 0 : index
    %12 = vector.load %arg2[%c0_6, %c0_7] : memref<8x32xf32, #tpu.memory_space<vmem>>, vector<8x32xf32>
    %c0_8 = arith.constant 0 : index
    %c0_9 = arith.constant 0 : index
    %13 = vector.load %arg1[%c0_8, %c0_9] : memref<64x32xbf16, #tpu.memory_space<vmem>>, vector<64x32xbf16>
    %cst_10 = arith.constant dense<0.000000e+00> : vector<16x32xf32>
    %14 = tpu.matmul %11, %13, %cst_10 {dimension_numbers = #tpu.dot_dimension_numbers<[1], [0], [0], [1], [0, 0, 1, 1], [], []>} : vector<16x64xbf16>, vector<64x32xbf16>, vector<16x32xf32> -> vector<16x32xf32>
    %15 = tpu.concatenate %12, %12 in 0 : vector<8x32xf32>, vector<8x32xf32> -> vector<16x32xf32>
    %16 = arith.addf %14, %15 : vector<16x32xf32>
    %17 = arith.truncf %16 : vector<16x32xf32> to vector<16x32xbf16>
    %18 = vector.extract_strided_slice %2 {offsets = [0, 0], sizes = [32, 96], strides = [1, 1]} : vector<32x128xbf16> to vector<32x96xbf16>
    %cst_11 = arith.constant dense<0.000000e+00> : vector<16x96xf32>
    %19 = tpu.matmul %17, %18, %cst_11 {dimension_numbers = #tpu.dot_dimension_numbers<[1], [0], [0], [1], [0, 0, 1, 1], [], []>} : vector<16x32xbf16>, vector<32x96xbf16>, vector<16x96xf32> -> vector<16x96xf32>
    %20 = vector.extract_strided_slice %1 {offsets = [0, 0], sizes = [1, 96], strides = [1, 1]} : vector<10x96xf32> to vector<1x96xf32>
    %21 = vector.broadcast %20 : vector<1x96xf32> to vector<16x96xf32>
    %22 = arith.addf %19, %21 : vector<16x96xf32>
    %23 = vector.extract_strided_slice %22 {offsets = [0, 0], sizes = [16, 32], strides = [1, 1]} : vector<16x96xf32> to vector<16x32xf32>
    %24 = vector.extract_strided_slice %22 {offsets = [0, 32], sizes = [16, 32], strides = [1, 1]} : vector<16x96xf32> to vector<16x32xf32>
    %25 = vector.extract_strided_slice %22 {offsets = [0, 64], sizes = [16, 32], strides = [1, 1]} : vector<16x96xf32> to vector<16x32xf32>
    %26 = vector.extract_strided_slice %0 {offsets = [0, 8], sizes = [2, 8], strides = [1, 1]} : vector<16x128xf32> to vector<2x8xf32>
    %cst_12 = arith.constant 1.000000e+00 : f32
    %27 = vector.broadcast %cst_12 : f32 to vector<2x8xf32>
    %28 = arith.subf %27, %26 : vector<2x8xf32>
    %cst_13 = arith.constant -2.38197633E+38 : f32
    %29 = vector.broadcast %cst_13 : f32 to vector<2x8xf32>
    %30 = arith.mulf %28, %29 : vector<2x8xf32>
    %31 = vector.extract_strided_slice %30 {offsets = [0, 0], sizes = [1, 8], strides = [1, 1]} : vector<2x8xf32> to vector<1x8xf32>
    %32 = vector.extract_strided_slice %23 {offsets = [0, 0], sizes = [8, 16], strides = [1, 1]} : vector<16x32xf32> to vector<8x16xf32>
    %33 = arith.truncf %32 : vector<8x16xf32> to vector<8x16xbf16>
    %34 = vector.extract_strided_slice %24 {offsets = [0, 0], sizes = [8, 16], strides = [1, 1]} : vector<16x32xf32> to vector<8x16xf32>
    %35 = arith.truncf %34 : vector<8x16xf32> to vector<8x16xbf16>
    %36 = vector.extract_strided_slice %25 {offsets = [0, 0], sizes = [8, 16], strides = [1, 1]} : vector<16x32xf32> to vector<8x16xf32>
    %37 = arith.truncf %36 : vector<8x16xf32> to vector<8x16xbf16>
    %cst_14 = arith.constant dense<0.000000e+00> : vector<8x8xf32>
    %38 = tpu.matmul %33, %35, %cst_14 {dimension_numbers = #tpu.dot_dimension_numbers<[1], [1], [0], [0], [0, 0, 1, 0], [], []>} : vector<8x16xbf16>, vector<8x16xbf16>, vector<8x8xf32> -> vector<8x8xf32>
    %39 = vector.broadcast %31 : vector<1x8xf32> to vector<8x8xf32>
    %40 = arith.addf %38, %39 : vector<8x8xf32>
    %cst_15 = arith.constant dense<0xFF800000> : vector<8xf32>
    %41 = vector.multi_reduction <maximumf>, %40, %cst_15 [1] : vector<8x8xf32> to vector<8xf32>
    %42 = vector.shape_cast %41 : vector<8xf32> to vector<8x1xf32>
    %43 = vector.broadcast %42 : vector<8x1xf32> to vector<8x8xf32>
    %44 = arith.subf %40, %43 : vector<8x8xf32>
    %45 = math.exp %44 : vector<8x8xf32>
    %cst_16 = arith.constant dense<0.000000e+00> : vector<8xf32>
    %46 = vector.multi_reduction <add>, %45, %cst_16 [1] : vector<8x8xf32> to vector<8xf32>
    %47 = vector.shape_cast %46 : vector<8xf32> to vector<8x1xf32>
    %48 = tpu.reciprocal %47 {approx = true} : vector<8x1xf32> -> vector<8x1xf32>
    %49 = vector.broadcast %48 : vector<8x1xf32> to vector<8x8xf32>
    %50 = arith.mulf %45, %49 : vector<8x8xf32>
    %51 = arith.truncf %50 : vector<8x8xf32> to vector<8x8xbf16>
    %cst_17 = arith.constant dense<0.000000e+00> : vector<8x16xf32>
    %52 = tpu.matmul %51, %37, %cst_17 {dimension_numbers = #tpu.dot_dimension_numbers<[1], [0], [0], [1], [0, 0, 1, 1], [], []>} : vector<8x8xbf16>, vector<8x16xbf16>, vector<8x16xf32> -> vector<8x16xf32>
    %53 = vector.extract_strided_slice %23 {offsets = [0, 16], sizes = [8, 16], strides = [1, 1]} : vector<16x32xf32> to vector<8x16xf32>
    %54 = arith.truncf %53 : vector<8x16xf32> to vector<8x16xbf16>
    %55 = vector.extract_strided_slice %24 {offsets = [0, 16], sizes = [8, 16], strides = [1, 1]} : vector<16x32xf32> to vector<8x16xf32>
    %56 = arith.truncf %55 : vector<8x16xf32> to vector<8x16xbf16>
    %57 = vector.extract_strided_slice %25 {offsets = [0, 16], sizes = [8, 16], strides = [1, 1]} : vector<16x32xf32> to vector<8x16xf32>
    %58 = arith.truncf %57 : vector<8x16xf32> to vector<8x16xbf16>
    %cst_18 = arith.constant dense<0.000000e+00> : vector<8x8xf32>
    %59 = tpu.matmul %54, %56, %cst_18 {dimension_numbers = #tpu.dot_dimension_numbers<[1], [1], [0], [0], [0, 0, 1, 0], [], []>} : vector<8x16xbf16>, vector<8x16xbf16>, vector<8x8xf32> -> vector<8x8xf32>
    %60 = vector.broadcast %31 : vector<1x8xf32> to vector<8x8xf32>
    %61 = arith.addf %59, %60 : vector<8x8xf32>
    %cst_19 = arith.constant dense<0xFF800000> : vector<8xf32>
    %62 = vector.multi_reduction <maximumf>, %61, %cst_19 [1] : vector<8x8xf32> to vector<8xf32>
    %63 = vector.shape_cast %62 : vector<8xf32> to vector<8x1xf32>
    %64 = vector.broadcast %63 : vector<8x1xf32> to vector<8x8xf32>
    %65 = arith.subf %61, %64 : vector<8x8xf32>
    %66 = math.exp %65 : vector<8x8xf32>
    %cst_20 = arith.constant dense<0.000000e+00> : vector<8xf32>
    %67 = vector.multi_reduction <add>, %66, %cst_20 [1] : vector<8x8xf32> to vector<8xf32>
    %68 = vector.shape_cast %67 : vector<8xf32> to vector<8x1xf32>
    %69 = tpu.reciprocal %68 {approx = true} : vector<8x1xf32> -> vector<8x1xf32>
    %70 = vector.broadcast %69 : vector<8x1xf32> to vector<8x8xf32>
    %71 = arith.mulf %66, %70 : vector<8x8xf32>
    %72 = arith.truncf %71 : vector<8x8xf32> to vector<8x8xbf16>
    %cst_21 = arith.constant dense<0.000000e+00> : vector<8x16xf32>
    %73 = tpu.matmul %72, %58, %cst_21 {dimension_numbers = #tpu.dot_dimension_numbers<[1], [0], [0], [1], [0, 0, 1, 1], [], []>} : vector<8x8xbf16>, vector<8x16xbf16>, vector<8x16xf32> -> vector<8x16xf32>
    %74 = tpu.concatenate %52, %73 in 1 : vector<8x16xf32>, vector<8x16xf32> -> vector<8x32xf32>
    %75 = vector.extract_strided_slice %30 {offsets = [1, 0], sizes = [1, 8], strides = [1, 1]} : vector<2x8xf32> to vector<1x8xf32>
    %76 = vector.extract_strided_slice %23 {offsets = [8, 0], sizes = [8, 16], strides = [1, 1]} : vector<16x32xf32> to vector<8x16xf32>
    %77 = arith.truncf %76 : vector<8x16xf32> to vector<8x16xbf16>
    %78 = vector.extract_strided_slice %24 {offsets = [8, 0], sizes = [8, 16], strides = [1, 1]} : vector<16x32xf32> to vector<8x16xf32>
    %79 = arith.truncf %78 : vector<8x16xf32> to vector<8x16xbf16>
    %80 = vector.extract_strided_slice %25 {offsets = [8, 0], sizes = [8, 16], strides = [1, 1]} : vector<16x32xf32> to vector<8x16xf32>
    %81 = arith.truncf %80 : vector<8x16xf32> to vector<8x16xbf16>
    %cst_22 = arith.constant dense<0.000000e+00> : vector<8x8xf32>
    %82 = tpu.matmul %77, %79, %cst_22 {dimension_numbers = #tpu.dot_dimension_numbers<[1], [1], [0], [0], [0, 0, 1, 0], [], []>} : vector<8x16xbf16>, vector<8x16xbf16>, vector<8x8xf32> -> vector<8x8xf32>
    %83 = vector.broadcast %75 : vector<1x8xf32> to vector<8x8xf32>
    %84 = arith.addf %82, %83 : vector<8x8xf32>
    %cst_23 = arith.constant dense<0xFF800000> : vector<8xf32>
    %85 = vector.multi_reduction <maximumf>, %84, %cst_23 [1] : vector<8x8xf32> to vector<8xf32>
    %86 = vector.shape_cast %85 : vector<8xf32> to vector<8x1xf32>
    %87 = vector.broadcast %86 : vector<8x1xf32> to vector<8x8xf32>
    %88 = arith.subf %84, %87 : vector<8x8xf32>
    %89 = math.exp %88 : vector<8x8xf32>
    %cst_24 = arith.constant dense<0.000000e+00> : vector<8xf32>
    %90 = vector.multi_reduction <add>, %89, %cst_24 [1] : vector<8x8xf32> to vector<8xf32>
    %91 = vector.shape_cast %90 : vector<8xf32> to vector<8x1xf32>
    %92 = tpu.reciprocal %91 {approx = true} : vector<8x1xf32> -> vector<8x1xf32>
    %93 = vector.broadcast %92 : vector<8x1xf32> to vector<8x8xf32>
    %94 = arith.mulf %89, %93 : vector<8x8xf32>
    %95 = arith.truncf %94 : vector<8x8xf32> to vector<8x8xbf16>
    %cst_25 = arith.constant dense<0.000000e+00> : vector<8x16xf32>
    %96 = tpu.matmul %95, %81, %cst_25 {dimension_numbers = #tpu.dot_dimension_numbers<[1], [0], [0], [1], [0, 0, 1, 1], [], []>} : vector<8x8xbf16>, vector<8x16xbf16>, vector<8x16xf32> -> vector<8x16xf32>
    %97 = vector.extract_strided_slice %23 {offsets = [8, 16], sizes = [8, 16], strides = [1, 1]} : vector<16x32xf32> to vector<8x16xf32>
    %98 = arith.truncf %97 : vector<8x16xf32> to vector<8x16xbf16>
    %99 = vector.extract_strided_slice %24 {offsets = [8, 16], sizes = [8, 16], strides = [1, 1]} : vector<16x32xf32> to vector<8x16xf32>
    %100 = arith.truncf %99 : vector<8x16xf32> to vector<8x16xbf16>
    %101 = vector.extract_strided_slice %25 {offsets = [8, 16], sizes = [8, 16], strides = [1, 1]} : vector<16x32xf32> to vector<8x16xf32>
    %102 = arith.truncf %101 : vector<8x16xf32> to vector<8x16xbf16>
    %cst_26 = arith.constant dense<0.000000e+00> : vector<8x8xf32>
    %103 = tpu.matmul %98, %100, %cst_26 {dimension_numbers = #tpu.dot_dimension_numbers<[1], [1], [0], [0], [0, 0, 1, 0], [], []>} : vector<8x16xbf16>, vector<8x16xbf16>, vector<8x8xf32> -> vector<8x8xf32>
    %104 = vector.broadcast %75 : vector<1x8xf32> to vector<8x8xf32>
    %105 = arith.addf %103, %104 : vector<8x8xf32>
    %cst_27 = arith.constant dense<0xFF800000> : vector<8xf32>
    %106 = vector.multi_reduction <maximumf>, %105, %cst_27 [1] : vector<8x8xf32> to vector<8xf32>
    %107 = vector.shape_cast %106 : vector<8xf32> to vector<8x1xf32>
    %108 = vector.broadcast %107 : vector<8x1xf32> to vector<8x8xf32>
    %109 = arith.subf %105, %108 : vector<8x8xf32>
    %110 = math.exp %109 : vector<8x8xf32>
    %cst_28 = arith.constant dense<0.000000e+00> : vector<8xf32>
    %111 = vector.multi_reduction <add>, %110, %cst_28 [1] : vector<8x8xf32> to vector<8xf32>
    %112 = vector.shape_cast %111 : vector<8xf32> to vector<8x1xf32>
    %113 = tpu.reciprocal %112 {approx = true} : vector<8x1xf32> -> vector<8x1xf32>
    %114 = vector.broadcast %113 : vector<8x1xf32> to vector<8x8xf32>
    %115 = arith.mulf %110, %114 : vector<8x8xf32>
    %116 = arith.truncf %115 : vector<8x8xf32> to vector<8x8xbf16>
    %cst_29 = arith.constant dense<0.000000e+00> : vector<8x16xf32>
    %117 = tpu.matmul %116, %102, %cst_29 {dimension_numbers = #tpu.dot_dimension_numbers<[1], [0], [0], [1], [0, 0, 1, 1], [], []>} : vector<8x8xbf16>, vector<8x16xbf16>, vector<8x16xf32> -> vector<8x16xf32>
    %118 = tpu.concatenate %96, %117 in 1 : vector<8x16xf32>, vector<8x16xf32> -> vector<8x32xf32>
    %119 = tpu.concatenate %74, %118 in 0 : vector<8x32xf32>, vector<8x32xf32> -> vector<16x32xf32>
    %120 = arith.truncf %119 : vector<16x32xf32> to vector<16x32xbf16>
    %121 = vector.extract_strided_slice %2 {offsets = [0, 96], sizes = [32, 32], strides = [1, 1]} : vector<32x128xbf16> to vector<32x32xbf16>
    %cst_30 = arith.constant dense<0.000000e+00> : vector<16x32xf32>
    %122 = tpu.matmul %120, %121, %cst_30 {dimension_numbers = #tpu.dot_dimension_numbers<[1], [0], [0], [1], [0, 0, 1, 1], [], []>} : vector<16x32xbf16>, vector<32x32xbf16>, vector<16x32xf32> -> vector<16x32xf32>
    %123 = vector.extract_strided_slice %1 {offsets = [1, 0], sizes = [1, 32], strides = [1, 1]} : vector<10x96xf32> to vector<1x32xf32>
    %124 = vector.broadcast %123 : vector<1x32xf32> to vector<16x32xf32>
    %125 = arith.addf %122, %124 : vector<16x32xf32>
    %126 = arith.addf %16, %125 : vector<16x32xf32>
    %127 = vector.extract_strided_slice %1 {offsets = [2, 0], sizes = [1, 32], strides = [1, 1]} : vector<10x96xf32> to vector<1x32xf32>
    %128 = vector.extract_strided_slice %1 {offsets = [3, 0], sizes = [1, 32], strides = [1, 1]} : vector<10x96xf32> to vector<1x32xf32>
    %cst_31 = arith.constant dense<0.000000e+00> : vector<16xf32>
    %129 = vector.multi_reduction <add>, %126, %cst_31 [1] : vector<16x32xf32> to vector<16xf32>
    %130 = vector.shape_cast %129 : vector<16xf32> to vector<16x1xf32>
    %cst_32 = arith.constant 3.200000e+01 : f32
    %131 = vector.broadcast %cst_32 : f32 to vector<16x1xf32>
    %132 = arith.divf %130, %131 : vector<16x1xf32>
    %133 = vector.broadcast %132 : vector<16x1xf32> to vector<16x32xf32>
    %134 = arith.subf %126, %133 : vector<16x32xf32>
    %135 = arith.mulf %134, %134 : vector<16x32xf32>
    %cst_33 = arith.constant dense<0.000000e+00> : vector<16xf32>
    %136 = vector.multi_reduction <add>, %135, %cst_33 [1] : vector<16x32xf32> to vector<16xf32>
    %137 = vector.shape_cast %136 : vector<16xf32> to vector<16x1xf32>
    %cst_34 = arith.constant 3.200000e+01 : f32
    %138 = vector.broadcast %cst_34 : f32 to vector<16x1xf32>
    %139 = arith.divf %137, %138 : vector<16x1xf32>
    %140 = vector.broadcast %132 : vector<16x1xf32> to vector<16x32xf32>
    %141 = arith.subf %126, %140 : vector<16x32xf32>
    %cst_35 = arith.constant 9.99999974E-6 : f32
    %142 = vector.broadcast %cst_35 : f32 to vector<16x1xf32>
    %143 = arith.addf %139, %142 : vector<16x1xf32>
    %144 = math.rsqrt %143 : vector<16x1xf32>
    %145 = vector.broadcast %144 : vector<16x1xf32> to vector<16x32xf32>
    %146 = arith.mulf %141, %145 : vector<16x32xf32>
    %147 = vector.broadcast %127 : vector<1x32xf32> to vector<16x32xf32>
    %148 = arith.mulf %146, %147 : vector<16x32xf32>
    %149 = vector.broadcast %128 : vector<1x32xf32> to vector<16x32xf32>
    %150 = arith.addf %148, %149 : vector<16x32xf32>
    %151 = arith.truncf %150 : vector<16x32xf32> to vector<16x32xbf16>
    %c0_36 = arith.constant 0 : index
    %c0_37 = arith.constant 0 : index
    %152 = vector.load %arg4[%c0_36, %c0_37] : memref<32x64xbf16, #tpu.memory_space<vmem>>, vector<32x64xbf16>
    %cst_38 = arith.constant dense<0.000000e+00> : vector<16x64xf32>
    %153 = tpu.matmul %151, %152, %cst_38 {dimension_numbers = #tpu.dot_dimension_numbers<[1], [0], [0], [1], [0, 0, 1, 1], [], []>} : vector<16x32xbf16>, vector<32x64xbf16>, vector<16x64xf32> -> vector<16x64xf32>
    %154 = vector.extract_strided_slice %1 {offsets = [4, 0], sizes = [1, 64], strides = [1, 1]} : vector<10x96xf32> to vector<1x64xf32>
    %155 = vector.broadcast %154 : vector<1x64xf32> to vector<16x64xf32>
    %156 = arith.addf %153, %155 : vector<16x64xf32>
    %cst_39 = arith.constant 5.000000e-01 : f32
    %157 = vector.broadcast %cst_39 : f32 to vector<16x64xf32>
    %158 = arith.mulf %157, %156 : vector<16x64xf32>
    %cst_40 = arith.constant 4.471500e-02 : f32
    %159 = vector.broadcast %cst_40 : f32 to vector<16x64xf32>
    %160 = arith.mulf %159, %156 : vector<16x64xf32>
    %161 = arith.mulf %160, %156 : vector<16x64xf32>
    %162 = arith.mulf %161, %156 : vector<16x64xf32>
    %163 = arith.addf %156, %162 : vector<16x64xf32>
    %cst_41 = arith.constant 0.797884583 : f32
    %164 = vector.broadcast %cst_41 : f32 to vector<16x64xf32>
    %165 = arith.mulf %164, %163 : vector<16x64xf32>
    %166 = math.tanh %165 : vector<16x64xf32>
    %cst_42 = arith.constant 1.000000e+00 : f32
    %167 = vector.broadcast %cst_42 : f32 to vector<16x64xf32>
    %168 = arith.addf %167, %166 : vector<16x64xf32>
    %169 = arith.mulf %158, %168 : vector<16x64xf32>
    %170 = arith.truncf %169 : vector<16x64xf32> to vector<16x64xbf16>
    %c0_43 = arith.constant 0 : index
    %c0_44 = arith.constant 0 : index
    %171 = vector.load %arg5[%c0_43, %c0_44] : memref<64x32xbf16, #tpu.memory_space<vmem>>, vector<64x32xbf16>
    %cst_45 = arith.constant dense<0.000000e+00> : vector<16x32xf32>
    %172 = tpu.matmul %170, %171, %cst_45 {dimension_numbers = #tpu.dot_dimension_numbers<[1], [0], [0], [1], [0, 0, 1, 1], [], []>} : vector<16x64xbf16>, vector<64x32xbf16>, vector<16x32xf32> -> vector<16x32xf32>
    %173 = vector.extract_strided_slice %1 {offsets = [5, 0], sizes = [1, 32], strides = [1, 1]} : vector<10x96xf32> to vector<1x32xf32>
    %174 = vector.broadcast %173 : vector<1x32xf32> to vector<16x32xf32>
    %175 = arith.addf %172, %174 : vector<16x32xf32>
    %176 = arith.addf %150, %175 : vector<16x32xf32>
    %177 = vector.extract_strided_slice %1 {offsets = [6, 0], sizes = [1, 32], strides = [1, 1]} : vector<10x96xf32> to vector<1x32xf32>
    %178 = vector.extract_strided_slice %1 {offsets = [7, 0], sizes = [1, 32], strides = [1, 1]} : vector<10x96xf32> to vector<1x32xf32>
    %cst_46 = arith.constant dense<0.000000e+00> : vector<16xf32>
    %179 = vector.multi_reduction <add>, %176, %cst_46 [1] : vector<16x32xf32> to vector<16xf32>
    %180 = vector.shape_cast %179 : vector<16xf32> to vector<16x1xf32>
    %cst_47 = arith.constant 3.200000e+01 : f32
    %181 = vector.broadcast %cst_47 : f32 to vector<16x1xf32>
    %182 = arith.divf %180, %181 : vector<16x1xf32>
    %183 = vector.broadcast %182 : vector<16x1xf32> to vector<16x32xf32>
    %184 = arith.subf %176, %183 : vector<16x32xf32>
    %185 = arith.mulf %184, %184 : vector<16x32xf32>
    %cst_48 = arith.constant dense<0.000000e+00> : vector<16xf32>
    %186 = vector.multi_reduction <add>, %185, %cst_48 [1] : vector<16x32xf32> to vector<16xf32>
    %187 = vector.shape_cast %186 : vector<16xf32> to vector<16x1xf32>
    %cst_49 = arith.constant 3.200000e+01 : f32
    %188 = vector.broadcast %cst_49 : f32 to vector<16x1xf32>
    %189 = arith.divf %187, %188 : vector<16x1xf32>
    %190 = vector.broadcast %182 : vector<16x1xf32> to vector<16x32xf32>
    %191 = arith.subf %176, %190 : vector<16x32xf32>
    %cst_50 = arith.constant 9.99999974E-6 : f32
    %192 = vector.broadcast %cst_50 : f32 to vector<16x1xf32>
    %193 = arith.addf %189, %192 : vector<16x1xf32>
    %194 = math.rsqrt %193 : vector<16x1xf32>
    %195 = vector.broadcast %194 : vector<16x1xf32> to vector<16x32xf32>
    %196 = arith.mulf %191, %195 : vector<16x32xf32>
    %197 = vector.broadcast %177 : vector<1x32xf32> to vector<16x32xf32>
    %198 = arith.mulf %196, %197 : vector<16x32xf32>
    %199 = vector.broadcast %178 : vector<1x32xf32> to vector<16x32xf32>
    %200 = arith.addf %198, %199 : vector<16x32xf32>
    %201 = vector.extract_strided_slice %200 {offsets = [0, 0], sizes = [1, 32], strides = [1, 1]} : vector<16x32xf32> to vector<1x32xf32>
    %202 = vector.extract_strided_slice %200 {offsets = [8, 0], sizes = [1, 32], strides = [1, 1]} : vector<16x32xf32> to vector<1x32xf32>
    %203 = tpu.concatenate %201, %202 in 0 : vector<1x32xf32>, vector<1x32xf32> -> vector<2x32xf32>
    %204 = vector.extract_strided_slice %0 {offsets = [0, 16], sizes = [2, 1], strides = [1, 1]} : vector<16x128xf32> to vector<2x1xf32>
    %cst_51 = arith.constant 1.000000e+00 : f32
    %205 = vector.broadcast %cst_51 : f32 to vector<2x1xf32>
    %206 = tpu.concatenate %203, %204, %205 in 1 : vector<2x32xf32>, vector<2x1xf32>, vector<2x1xf32> -> vector<2x34xf32>
    %207 = vector.extract_strided_slice %1 {offsets = [8, 0], sizes = [2, 34], strides = [1, 1]} : vector<10x96xf32> to vector<2x34xf32>
    %cst_52 = arith.constant dense<0.000000e+00> : vector<2x2xf32>
    %208 = tpu.matmul %206, %207, %cst_52 {dimension_numbers = #tpu.dot_dimension_numbers<[1], [1], [0], [0], [0, 0, 1, 0], [], []>} : vector<2x34xf32>, vector<2x34xf32>, vector<2x2xf32> -> vector<2x2xf32>
    %cst_53 = arith.constant 0.000000e+00 : f32
    %209 = vector.broadcast %cst_53 : f32 to vector<2x126xf32>
    %210 = tpu.concatenate %208, %209 in 1 : vector<2x2xf32>, vector<2x126xf32> -> vector<2x128xf32>
    %211 = vector.extract_strided_slice %0 {offsets = [0, 24], sizes = [2, 2], strides = [1, 1]} : vector<16x128xf32> to vector<2x2xf32>
    %cst_54 = arith.constant dense<0xFF800000> : vector<2xf32>
    %212 = vector.multi_reduction <maximumf>, %208, %cst_54 [1] : vector<2x2xf32> to vector<2xf32>
    %213 = vector.shape_cast %212 : vector<2xf32> to vector<2x1xf32>
    %214 = vector.broadcast %213 : vector<2x1xf32> to vector<2x2xf32>
    %215 = arith.subf %208, %214 : vector<2x2xf32>
    %216 = math.exp %215 : vector<2x2xf32>
    %cst_55 = arith.constant dense<0.000000e+00> : vector<2xf32>
    %217 = vector.multi_reduction <add>, %216, %cst_55 [1] : vector<2x2xf32> to vector<2xf32>
    %218 = vector.shape_cast %217 : vector<2xf32> to vector<2x1xf32>
    %219 = math.log %218 : vector<2x1xf32>
    %220 = arith.addf %213, %219 : vector<2x1xf32>
    %221 = arith.mulf %208, %211 : vector<2x2xf32>
    %cst_56 = arith.constant dense<0.000000e+00> : vector<2xf32>
    %222 = vector.multi_reduction <add>, %221, %cst_56 [1] : vector<2x2xf32> to vector<2xf32>
    %223 = vector.shape_cast %222 : vector<2xf32> to vector<2x1xf32>
    %224 = arith.subf %220, %223 : vector<2x1xf32>
    %cst_57 = arith.constant dense<0.000000e+00> : vector<1xf32>
    %225 = vector.multi_reduction <add>, %224, %cst_57 [0] : vector<2x1xf32> to vector<1xf32>
    %226 = vector.shape_cast %225 : vector<1xf32> to vector<1x1xf32>
    %cst_58 = arith.constant 2.000000e+00 : f32
    %227 = vector.broadcast %cst_58 : f32 to vector<1x1xf32>
    %228 = arith.divf %226, %227 : vector<1x1xf32>
    %cst_59 = arith.constant 0.000000e+00 : f32
    %229 = vector.broadcast %cst_59 : f32 to vector<1x127xf32>
    %230 = tpu.concatenate %228, %229 in 1 : vector<1x1xf32>, vector<1x127xf32> -> vector<1x128xf32>
    %cst_60 = arith.constant 0.000000e+00 : f32
    %231 = vector.broadcast %cst_60 : f32 to vector<5x128xf32>
    %232 = tpu.concatenate %210, %230, %231 in 0 : vector<2x128xf32>, vector<1x128xf32>, vector<5x128xf32> -> vector<8x128xf32>
    %c0_61 = arith.constant 0 : index
    %c0_62 = arith.constant 0 : index
    %233 = vector.load %arg7[%c0_61, %c0_62] : memref<8x128xf32, #tpu.memory_space<vmem>>, vector<8x128xf32>
    tpu.vector_store %arg7[%c0_61, %c0_62], %232 {strides = array<i32>} : memref<8x128xf32, #tpu.memory_space<vmem>>, vector<8x128xf32>,
    return
  }
}

</mosaic_0001>

<llo_original>
// kernel: tpu_custom_call.1
$region0: #{tpu_custom_call.1}
  #allocation0 [shape = 'u32[]', space=smem, size = 0x4, offset = 0x4, fixed_abs, tag = 'smem constant byte address 0x4 - core index']
  #allocation1 [shape = 'u32[144,128]{1,0:T(1,128)}', space=vmem, size = 0x12000, scoped, tag = 'internal scratch']
  %s0 = inlined_call_operand.vmem [shape: f32[16,128], index: 0, kind: input, shape index: {}]
  %s1 = inlined_call_operand.vmem [shape: bf16[64,32], index: 1, kind: input, shape index: {}]
  %s2 = inlined_call_operand.vmem [shape: f32[8,32], index: 2, kind: input, shape index: {}]
  %s3 = inlined_call_operand.vmem [shape: bf16[32,128], index: 3, kind: input, shape index: {}]
  %s4 = inlined_call_operand.vmem [shape: bf16[32,64], index: 4, kind: input, shape index: {}]
  %s5 = inlined_call_operand.vmem [shape: bf16[64,32], index: 5, kind: input, shape index: {}]
  %s6 = inlined_call_operand.vmem [shape: f32[10,96], index: 6, kind: input, shape index: {}]
  %s7 = inlined_call_operand.hbm [shape: f32[8,128], index: 7, kind: output, shape index: {}]
  %s8 = sld [smem:[#allocation0]]
  $region38: #{tpu_custom_call.1} parent=0
    _
  %s10 = ssub.s32 1, %s8
  %s11 = scalar_select 0, %s10, %s8
  $region1: #{tpu_custom_call.1} parent=0
    #allocation2 [shape = 'u8[4096]{0}', space=vmem, size = 0x1000, scoped, tag = 'output window, operand 0, single buffered']
    #allocation3 [shape = 's32[1]{0}', space=sflag, size = 0x4, scoped, tag = 'scoped memory for tpu_custom_call.1']
    %12 = vsyncpa [#allocation3], 0
    // Predicated region
    $region2: #{tpu_custom_call.1} parent=1 // pred_check
      _
    $region3: #{tpu_custom_call.1} parent=1 // pred_check_branch
      %14 = sbr.rel (0) target = $region5
    $region4: #{tpu_custom_call.1} parent=1 // pred_region
      _
    $region5: #{tpu_custom_call.1} parent=1 // pred_fallthru
      _
    // Predicated region
    $region6: #{tpu_custom_call.1} parent=1 // pred_check
      _
    $region7: #{tpu_custom_call.1} parent=1 // pred_check_branch
      %16 = sbr.rel (0) target = $region9
    $region8: #{tpu_custom_call.1} parent=1 // pred_region
      _
    $region9: #{tpu_custom_call.1} parent=1 // pred_fallthru
      _
    // Predicated region
    $region10: #{tpu_custom_call.1} parent=1 // pred_check
      _
    $region11: #{tpu_custom_call.1} parent=1 // pred_check_branch
      %18 = sbr.rel (0) target = $region13
    $region12: #{tpu_custom_call.1} parent=1 // pred_region
      _
    $region13: #{tpu_custom_call.1} parent=1 // pred_fallthru
      _
    // Predicated region
    $region14: #{tpu_custom_call.1} parent=1 // pred_check
      _
    $region15: #{tpu_custom_call.1} parent=1 // pred_check_branch
      %20 = sbr.rel (0) target = $region17
    $region16: #{tpu_custom_call.1} parent=1 // pred_region
      _
    $region17: #{tpu_custom_call.1} parent=1 // pred_fallthru
      _
    // Predicated region
    $region18: #{tpu_custom_call.1} parent=1 // pred_check
      _
    $region19: #{tpu_custom_call.1} parent=1 // pred_check_branch
      %22 = sbr.rel (0) target = $region21
    $region20: #{tpu_custom_call.1} parent=1 // pred_region
      _
    $region21: #{tpu_custom_call.1} parent=1 // pred_fallthru
      _
    // Predicated region
    $region22: #{tpu_custom_call.1} parent=1 // pred_check
      _
    $region23: #{tpu_custom_call.1} parent=1 // pred_check_branch
      %24 = sbr.rel (0) target = $region25
    $region24: #{tpu_custom_call.1} parent=1 // pred_region
      _
    $region25: #{tpu_custom_call.1} parent=1 // pred_fallthru
      _
    // Predicated region
    $region26: #{tpu_custom_call.1} parent=1 // pred_check
      _
    $region27: #{tpu_custom_call.1} parent=1 // pred_check_branch
      %26 = sbr.rel (0) target = $region29
    $region28: #{tpu_custom_call.1} parent=1 // pred_region
      _
    $region29: #{tpu_custom_call.1} parent=1 // pred_fallthru
      _
    %v28 = vld [vmem:[%s0] sm:$0xff]
    %v29 = vld [vmem:[%s0 + $0x8] sm:$0xff]
    %v30 = vld [vmem:[%s6] sm:$0xff]
    %v31 = vld [vmem:[%s6 + $0x8] sm:$0x3]
    %v32 = vld [vmem:[%s3] sm:$0xf]
    %v33 = vld [vmem:[%s3 + $0x4] sm:$0xf]
    %v34 = vld [vmem:[%s3 + $0x8] sm:$0xf]
    %v35 = vld [vmem:[%s3 + $0xc] sm:$0xf]
    %v36 = vlaneseq
    %v37 = vand.u32 %v36, 127
    %v38 = vcvt.s32.f32 %v37
    %40 = vset.pattern.permute.xlu0 0
    %41 = vperm.xlu0 %40, %v28
    %v42 = vpop.permute.xlu0 %41
    %45 = vset.pattern.permute.xlu0 0
    %46 = vperm.xlu0 %45, %v29
    %v47 = vpop.permute.xlu0 %46
    %vm49 = vcmp.eq.f32.partialorder %v42, %v38
    %vm50 = vcmp.eq.f32.partialorder %v47, %v38
    %v51 = vsel %vm49, 1.0, 0.0
    %v52 = vsel %vm50, 1.0, 0.0
    %v53 = vpack.c.bf16 %v52, %v51
    %v54 = vld [vmem:[%s2] sm:$0xff]
    %v55 = vld [vmem:[%s1] sm:$0xf]
    %v56 = vld [vmem:[%s1 + $0x4] sm:$0xf]
    %v57 = vld [vmem:[%s1 + $0x8] sm:$0xf]
    %v58 = vld [vmem:[%s1 + $0xc] sm:$0xf]
    %v59 = vld [vmem:[%s1 + $0x10] sm:$0xf]
    %v60 = vld [vmem:[%s1 + $0x14] sm:$0xf]
    %v61 = vld [vmem:[%s1 + $0x18] sm:$0xf]
    %v62 = vld [vmem:[%s1 + $0x1c] sm:$0xf]
    %v71 = vunpack.c.l.b16 %v55
    %v72 = vunpack.c.l.b16 %v56
    %v73 = vunpack.c.l.b16 %v57
    %v74 = vunpack.c.l.b16 %v58
    %v75 = vunpack.c.l.b16 %v59
    %v76 = vunpack.c.l.b16 %v60
    %v77 = vunpack.c.l.b16 %v61
    %v78 = vunpack.c.l.b16 %v62
    %v79 = vpack.c.b16 %v72, %v71
    %v80 = vpack.c.b16 %v74, %v73
    %v81 = vpack.c.b16 %v76, %v75
    %v82 = vpack.c.b16 %v78, %v77
    %vm87 = vcmask 523264
    %v89 = vsel %vm87, %v53, 0
    %91 = vmatprep.subr.bf16.mxu0 0
    %92 = vmatpush1.bf16.msra.mxu0 %v79
    %93 = vmatprep.subr.bf16.mxu0 0
    %94 = vmatpush1.bf16.msra.mxu0 %v80
    %95 = vmatprep.subr.bf16.mxu0 0
    %96 = vmatpush1.bf16.msra.mxu0 %v81
    %97 = vmatprep.subr.bf16.mxu0 0
    %98 = vmatpush1.bf16.msra.mxu0 %v82
    %99 = vmatprep.subr.bf16.mxu0 0
    %100 = vmatpush1.bf16.msra.mxu0 0
    %101 = vmatprep.subr.bf16.mxu0 0
    %102 = vmatpush1.bf16.msra.mxu0 0
    %103 = vmatprep.subr.bf16.mxu0 0
    %104 = vmatpush1.bf16.msra.mxu0 0
    %105 = vmatprep.subr.bf16.mxu0 0
    %106 = vmatpush1.bf16.msra.mxu0 0
    %107 = vmatprep.subr.bf16.mxu0 0
    %108 = vmatpush1.bf16.msra.mxu0 0
    %109 = vmatprep.subr.bf16.mxu0 0
    %110 = vmatpush1.bf16.msra.mxu0 0
    %111 = vmatprep.subr.bf16.mxu0 0
    %112 = vmatpush1.bf16.msra.mxu0 0
    %113 = vmatprep.subr.bf16.mxu0 0
    %114 = vmatpush1.bf16.msra.mxu0 0
    %115 = vmatprep.subr.bf16.mxu0 0
    %116 = vmatpush1.bf16.msra.mxu0 0
    %117 = vmatprep.subr.bf16.mxu0 0
    %118 = vmatpush1.bf16.msra.mxu0 0
    %119 = vmatprep.subr.bf16.mxu0 0
    %120 = vmatpush1.bf16.msra.mxu0 0
    %121 = vmatprep.subr.bf16.mxu0 0
    %122 = vmatpush1.bf16.msra.mxu0 0
    %123 = vmatprep.mubr.bf16.mxu0 0
    %124 = vmatmul.mubr.bf16.gmra.mrb[0].mxu0 %v89
    %v125 = vpop.f32.mrb[0].mxu0
    %v126 = vadd.f32 %v54, %v125
    %v127 = vpop.f32.mrb[0].mxu0
    %v128 = vpop.f32.mrb[0].mxu0
    %v129 = vadd.f32 %v54, %v128
    %v130 = vpop.f32.mrb[0].mxu0
    %131 = vdwg.mxu0
    %v132 = vpack.c.bf16 %v129, %v126
    %v133 = vlaneseq
    %v134 = vshrl.u32 %v133, 7
    %v135 = vsub.s32 0, %v134
    %v136 = vrot.slane %v30, %v135
    %v141 = vunpack.c.l.b16 %v32
    %v142 = vunpack.c.l.b16 %v33
    %v143 = vunpack.c.l.b16 %v34
    %v144 = vunpack.c.l.b16 %v35
    %v145 = vpack.c.b16 %v142, %v141
    %v146 = vpack.c.b16 %v144, %v143
    %vm149 = vcmask 261120
    %v151 = vsel %vm149, %v132, 0
    %153 = vmatprep.subr.bf16.mxu0 0
    %154 = vmatpush1.bf16.msra.mxu0 %v145
    %155 = vmatprep.subr.bf16.mxu0 0
    %156 = vmatpush1.bf16.msra.mxu0 %v146
    %157 = vmatprep.subr.bf16.mxu0 0
    %158 = vmatpush1.bf16.msra.mxu0 0
    %159 = vmatprep.subr.bf16.mxu0 0
    %160 = vmatpush1.bf16.msra.mxu0 0
    %161 = vmatprep.subr.bf16.mxu0 0
    %162 = vmatpush1.bf16.msra.mxu0 0
    %163 = vmatprep.subr.bf16.mxu0 0
    %164 = vmatpush1.bf16.msra.mxu0 0
    %165 = vmatprep.subr.bf16.mxu0 0
    %166 = vmatpush1.bf16.msra.mxu0 0
    %167 = vmatprep.subr.bf16.mxu0 0
    %168 = vmatpush1.bf16.msra.mxu0 0
    %169 = vmatprep.subr.bf16.mxu0 0
    %170 = vmatpush1.bf16.msra.mxu0 0
    %171 = vmatprep.subr.bf16.mxu0 0
    %172 = vmatpush1.bf16.msra.mxu0 0
    %173 = vmatprep.subr.bf16.mxu0 0
    %174 = vmatpush1.bf16.msra.mxu0 0
    %175 = vmatprep.subr.bf16.mxu0 0
    %176 = vmatpush1.bf16.msra.mxu0 0
    %177 = vmatprep.subr.bf16.mxu0 0
    %178 = vmatpush1.bf16.msra.mxu0 0
    %179 = vmatprep.subr.bf16.mxu0 0
    %180 = vmatpush1.bf16.msra.mxu0 0
    %181 = vmatprep.subr.bf16.mxu0 0
    %182 = vmatpush1.bf16.msra.mxu0 0
    %183 = vmatprep.subr.bf16.mxu0 0
    %184 = vmatpush1.bf16.msra.mxu0 0
    %185 = vmatprep.mubr.bf16.mxu0 0
    %186 = vmatmul.mubr.bf16.gmra.mrb[0].mxu0 %v151
    %v187 = vpop.f32.mrb[0].mxu0
    %v188 = vadd.f32 %v136, %v187
    %v189 = vpop.f32.mrb[0].mxu0
    %v190 = vpop.f32.mrb[0].mxu0
    %v191 = vadd.f32 %v136, %v190
    %v192 = vpop.f32.mrb[0].mxu0
    %193 = vdwg.mxu0
    %v194 = vsub.f32 1.0, %v28
    %v195 = vmul.f32 %v194, -2.3819763e+38
    %v196 = vpack.c.bf16 %v188, %v188
    %v197 = vlaneseq
    %v198 = vshrl.u32 %v197, 7
    %v199 = vsub.s32 0, %v198
    %v200 = vrot.slane %v195, %v199
    %202 = vrot.lane.b32.xlu0 %v196, 96
    %v203 = vpop.permute.xlu0 %202
    %205 = vrot.lane.b32.xlu0 %v200, 120
    %v206 = vpop.permute.xlu0 %205
    %vm208 = vcmask 130048
    %v210 = vsel %vm208, %v196, 0
    %v213 = vsel %vm208, %v203, 0
    %215 = vmatprep.subr.bf16.mxu0 0
    %216 = vmatpush1.bf16.xpose.msra.mxu0 %v213
    %217 = vmatprep.subr.bf16.mxu0 0
    %218 = vmatpush1.bf16.xpose.msra.mxu0 0
    %219 = vmatprep.subr.bf16.mxu0 0
    %220 = vmatpush1.bf16.xpose.msra.mxu0 0
    %221 = vmatprep.subr.bf16.mxu0 0
    %222 = vmatpush1.bf16.xpose.msra.mxu0 0
    %223 = vmatprep.subr.bf16.mxu0 0
    %224 = vmatpush1.bf16.xpose.msra.mxu0 0
    %225 = vmatprep.subr.bf16.mxu0 0
    %226 = vmatpush1.bf16.xpose.msra.mxu0 0
    %227 = vmatprep.subr.bf16.mxu0 0
    %228 = vmatpush1.bf16.xpose.msra.mxu0 0
    %229 = vmatprep.subr.bf16.mxu0 0
    %230 = vmatpush1.bf16.xpose.msra.mxu0 0
    %231 = vmatprep.subr.bf16.mxu0 0
    %232 = vmatpush1.bf16.xpose.msra.mxu0 0
    %233 = vmatprep.subr.bf16.mxu0 0
    %234 = vmatpush1.bf16.xpose.msra.mxu0 0
    %235 = vmatprep.subr.bf16.mxu0 0
    %236 = vmatpush1.bf16.xpose.msra.mxu0 0
    %237 = vmatprep.subr.bf16.mxu0 0
    %238 = vmatpush1.bf16.xpose.msra.mxu0 0
    %239 = vmatprep.subr.bf16.mxu0 0
    %240 = vmatpush1.bf16.xpose.msra.mxu0 0
    %241 = vmatprep.subr.bf16.mxu0 0
    %242 = vmatpush1.bf16.xpose.msra.mxu0 0
    %243 = vmatprep.subr.bf16.mxu0 0
    %244 = vmatpush1.bf16.xpose.msra.mxu0 0
    %245 = vmatprep.subr.bf16.mxu0 0
    %246 = vmatpush1.bf16.xpose.msra.mxu0 0
    %247 = vmatprep.mubr.bf16.mxu0 0
    %248 = vmatmul.mubr.bf16.gmra.mrb[0].mxu0 %v210
    %v249 = vpop.f32.mrb[0].mxu0
    %v250 = vadd.f32 %v206, %v249
    %v251 = vpop.f32.mrb[0].mxu0
    %v252 = vpop.f32.mrb[0].mxu0
    %v253 = vpop.f32.mrb[0].mxu0
    %254 = vdwg.mxu0
    %vm255 = vcmask 64512
    %v256 = vsel %vm255, %v250, -inf
    %257 = vmax.xlane.f32.xlu0 %v256
    %v258 = vpop.xlane.xlu0 %257
    %v259 = vsub.f32 %v250, %v258
    %v260 = vmul.f32 %v259, 1.442695
    %v261 = vpow.pop %v260
    %v262 = vsel %vm255, %v261, 0.0
    %263 = vadd.xlane.f32.xlu0 %v262
    %v264 = vpop.xlane.xlu0 %263
    %v265 = vrcp.pop %v264
    %v266 = vmul.f32 %v261, %v265
    %v267 = vpack.c.bf16 %v266, %v266
    %268 = vrot.lane.b32.xlu0 %v196, 64
    %v269 = vpop.permute.xlu0 %268
    %v271 = vsel %vm255, %v267, 0
    %vm273 = vcmask 1043456
    %v275 = vsel %vm273, %v269, 0
    %277 = vmatprep.subr.bf16.mxu0 0
    %278 = vmatpush1.bf16.msra.mxu0 %v275
    %279 = vmatprep.subr.bf16.mxu0 0
    %280 = vmatpush1.bf16.msra.mxu0 0
    %281 = vmatprep.subr.bf16.mxu0 0
    %282 = vmatpush1.bf16.msra.mxu0 0
    %283 = vmatprep.subr.bf16.mxu0 0
    %284 = vmatpush1.bf16.msra.mxu0 0
    %285 = vmatprep.subr.bf16.mxu0 0
    %286 = vmatpush1.bf16.msra.mxu0 0
    %287 = vmatprep.subr.bf16.mxu0 0
    %288 = vmatpush1.bf16.msra.mxu0 0
    %289 = vmatprep.subr.bf16.mxu0 0
    %290 = vmatpush1.bf16.msra.mxu0 0
    %291 = vmatprep.subr.bf16.mxu0 0
    %292 = vmatpush1.bf16.msra.mxu0 0
    %293 = vmatprep.subr.bf16.mxu0 0
    %294 = vmatpush1.bf16.msra.mxu0 0
    %295 = vmatprep.subr.bf16.mxu0 0
    %296 = vmatpush1.bf16.msra.mxu0 0
    %297 = vmatprep.subr.bf16.mxu0 0
    %298 = vmatpush1.bf16.msra.mxu0 0
    %299 = vmatprep.subr.bf16.mxu0 0
    %300 = vmatpush1.bf16.msra.mxu0 0
    %301 = vmatprep.subr.bf16.mxu0 0
    %302 = vmatpush1.bf16.msra.mxu0 0
    %303 = vmatprep.subr.bf16.mxu0 0
    %304 = vmatpush1.bf16.msra.mxu0 0
    %305 = vmatprep.subr.bf16.mxu0 0
    %306 = vmatpush1.bf16.msra.mxu0 0
    %307 = vmatprep.subr.bf16.mxu0 0
    %308 = vmatpush1.bf16.msra.mxu0 0
    %309 = vmatprep.mubr.bf16.mxu0 0
    %310 = vmatmul.mubr.bf16.gmra.mrb[0].mxu0 %v271
    %v311 = vpop.f32.mrb[0].mxu0
    %v312 = vadd.f32 0.0, %v311
    %v313 = vpop.f32.mrb[0].mxu0
    %v314 = vpop.f32.mrb[0].mxu0
    %v315 = vpop.f32.mrb[0].mxu0
    %316 = vdwg.mxu0
    %317 = vrot.lane.b32.xlu0 %v196, 112
    %v318 = vpop.permute.xlu0 %317
    %319 = vrot.lane.b32.xlu0 %v196, 80
    %v320 = vpop.permute.xlu0 %319
    %v322 = vsel %vm208, %v318, 0
    %v325 = vsel %vm208, %v320, 0
    %327 = vmatprep.subr.bf16.mxu0 0
    %328 = vmatpush1.bf16.xpose.msra.mxu0 %v325
    %329 = vmatprep.subr.bf16.mxu0 0
    %330 = vmatpush1.bf16.xpose.msra.mxu0 0
    %331 = vmatprep.subr.bf16.mxu0 0
    %332 = vmatpush1.bf16.xpose.msra.mxu0 0
    %333 = vmatprep.subr.bf16.mxu0 0
    %334 = vmatpush1.bf16.xpose.msra.mxu0 0
    %335 = vmatprep.subr.bf16.mxu0 0
    %336 = vmatpush1.bf16.xpose.msra.mxu0 0
    %337 = vmatprep.subr.bf16.mxu0 0
    %338 = vmatpush1.bf16.xpose.msra.mxu0 0
    %339 = vmatprep.subr.bf16.mxu0 0
    %340 = vmatpush1.bf16.xpose.msra.mxu0 0
    %341 = vmatprep.subr.bf16.mxu0 0
    %342 = vmatpush1.bf16.xpose.msra.mxu0 0
    %343 = vmatprep.subr.bf16.mxu0 0
    %344 = vmatpush1.bf16.xpose.msra.mxu0 0
    %345 = vmatprep.subr.bf16.mxu0 0
    %346 = vmatpush1.bf16.xpose.msra.mxu0 0
    %347 = vmatprep.subr.bf16.mxu0 0
    %348 = vmatpush1.bf16.xpose.msra.mxu0 0
    %349 = vmatprep.subr.bf16.mxu0 0
    %350 = vmatpush1.bf16.xpose.msra.mxu0 0
    %351 = vmatprep.subr.bf16.mxu0 0
    %352 = vmatpush1.bf16.xpose.msra.mxu0 0
    %353 = vmatprep.subr.bf16.mxu0 0
    %354 = vmatpush1.bf16.xpose.msra.mxu0 0
    %355 = vmatprep.subr.bf16.mxu0 0
    %356 = vmatpush1.bf16.xpose.msra.mxu0 0
    %357 = vmatprep.subr.bf16.mxu0 0
    %358 = vmatpush1.bf16.xpose.msra.mxu0 0
    %359 = vmatprep.mubr.bf16.mxu0 0
    %360 = vmatmul.mubr.bf16.gmra.mrb[0].mxu0 %v322
    %v361 = vpop.f32.mrb[0].mxu0
    %v362 = vadd.f32 %v206, %v361
    %v363 = vpop.f32.mrb[0].mxu0
    %v364 = vpop.f32.mrb[0].mxu0
    %v365 = vpop.f32.mrb[0].mxu0
    %366 = vdwg.mxu0
    %v367 = vsel %vm255, %v362, -inf
    %368 = vmax.xlane.f32.xlu0 %v367
    %v369 = vpop.xlane.xlu0 %368
    %v370 = vsub.f32 %v362, %v369
    %v371 = vmul.f32 %v370, 1.442695
    %v372 = vpow.pop %v371
    %v373 = vsel %vm255, %v372, 0.0
    %374 = vadd.xlane.f32.xlu0 %v373
    %v375 = vpop.xlane.xlu0 %374
    %v376 = vrcp.pop %v375
    %v377 = vmul.f32 %v372, %v376
    %v378 = vpack.c.bf16 %v377, %v377
    %379 = vrot.lane.b32.xlu0 %v196, 48
    %v380 = vpop.permute.xlu0 %379
    %v382 = vsel %vm255, %v378, 0
    %v385 = vsel %vm273, %v380, 0
    %387 = vmatprep.subr.bf16.mxu0 0
    %388 = vmatpush1.bf16.msra.mxu0 %v385
    %389 = vmatprep.subr.bf16.mxu0 0
    %390 = vmatpush1.bf16.msra.mxu0 0
    %391 = vmatprep.subr.bf16.mxu0 0
    %392 = vmatpush1.bf16.msra.mxu0 0
    %393 = vmatprep.subr.bf16.mxu0 0
    %394 = vmatpush1.bf16.msra.mxu0 0
    %395 = vmatprep.subr.bf16.mxu0 0
    %396 = vmatpush1.bf16.msra.mxu0 0
    %397 = vmatprep.subr.bf16.mxu0 0
    %398 = vmatpush1.bf16.msra.mxu0 0
    %399 = vmatprep.subr.bf16.mxu0 0
    %400 = vmatpush1.bf16.msra.mxu0 0
    %401 = vmatprep.subr.bf16.mxu0 0
    %402 = vmatpush1.bf16.msra.mxu0 0
    %403 = vmatprep.subr.bf16.mxu0 0
    %404 = vmatpush1.bf16.msra.mxu0 0
    %405 = vmatprep.subr.bf16.mxu0 0
    %406 = vmatpush1.bf16.msra.mxu0 0
    %407 = vmatprep.subr.bf16.mxu0 0
    %408 = vmatpush1.bf16.msra.mxu0 0
    %409 = vmatprep.subr.bf16.mxu0 0
    %410 = vmatpush1.bf16.msra.mxu0 0
    %411 = vmatprep.subr.bf16.mxu0 0
    %412 = vmatpush1.bf16.msra.mxu0 0
    %413 = vmatprep.subr.bf16.mxu0 0
    %414 = vmatpush1.bf16.msra.mxu0 0
    %415 = vmatprep.subr.bf16.mxu0 0
    %416 = vmatpush1.bf16.msra.mxu0 0
    %417 = vmatprep.subr.bf16.mxu0 0
    %418 = vmatpush1.bf16.msra.mxu0 0
    %419 = vmatprep.mubr.bf16.mxu0 0
    %420 = vmatmul.mubr.bf16.gmra.mrb[0].mxu0 %v382
    %v421 = vpop.f32.mrb[0].mxu0
    %v422 = vadd.f32 0.0, %v421
    %v423 = vpop.f32.mrb[0].mxu0
    %v424 = vpop.f32.mrb[0].mxu0
    %v425 = vpop.f32.mrb[0].mxu0
    %426 = vdwg.mxu0
    %428 = vrot.lane.b32.xlu0 %v422, 16
    %v429 = vpop.permute.xlu0 %428
    %v431 = vsel %vm208, %v312, %v429
    %v432 = vpack.c.bf16 %v191, %v191
    %v433 = vlaneseq
    %v434 = vshrl.u32 %v433, 7
    %v435 = vsub.s32 1, %v434
    %v436 = vrot.slane %v195, %v435
    %438 = vrot.lane.b32.xlu0 %v432, 96
    %v439 = vpop.permute.xlu0 %438
    %441 = vrot.lane.b32.xlu0 %v436, 120
    %v442 = vpop.permute.xlu0 %441
    %v445 = vsel %vm208, %v432, 0
    %v448 = vsel %vm208, %v439, 0
    %450 = vmatprep.subr.bf16.mxu0 0
    %451 = vmatpush1.bf16.xpose.msra.mxu0 %v448
    %452 = vmatprep.subr.bf16.mxu0 0
    %453 = vmatpush1.bf16.xpose.msra.mxu0 0
    %454 = vmatprep.subr.bf16.mxu0 0
    %455 = vmatpush1.bf16.xpose.msra.mxu0 0
    %456 = vmatprep.subr.bf16.mxu0 0
    %457 = vmatpush1.bf16.xpose.msra.mxu0 0
    %458 = vmatprep.subr.bf16.mxu0 0
    %459 = vmatpush1.bf16.xpose.msra.mxu0 0
    %460 = vmatprep.subr.bf16.mxu0 0
    %461 = vmatpush1.bf16.xpose.msra.mxu0 0
    %462 = vmatprep.subr.bf16.mxu0 0
    %463 = vmatpush1.bf16.xpose.msra.mxu0 0
    %464 = vmatprep.subr.bf16.mxu0 0
    %465 = vmatpush1.bf16.xpose.msra.mxu0 0
    %466 = vmatprep.subr.bf16.mxu0 0
    %467 = vmatpush1.bf16.xpose.msra.mxu0 0
    %468 = vmatprep.subr.bf16.mxu0 0
    %469 = vmatpush1.bf16.xpose.msra.mxu0 0
    %470 = vmatprep.subr.bf16.mxu0 0
    %471 = vmatpush1.bf16.xpose.msra.mxu0 0
    %472 = vmatprep.subr.bf16.mxu0 0
    %473 = vmatpush1.bf16.xpose.msra.mxu0 0
    %474 = vmatprep.subr.bf16.mxu0 0
    %475 = vmatpush1.bf16.xpose.msra.mxu0 0
    %476 = vmatprep.subr.bf16.mxu0 0
    %477 = vmatpush1.bf16.xpose.msra.mxu0 0
    %478 = vmatprep.subr.bf16.mxu0 0
    %479 = vmatpush1.bf16.xpose.msra.mxu0 0
    %480 = vmatprep.subr.bf16.mxu0 0
    %481 = vmatpush1.bf16.xpose.msra.mxu0 0
    %482 = vmatprep.mubr.bf16.mxu0 0
    %483 = vmatmul.mubr.bf16.gmra.mrb[0].mxu0 %v445
    %v484 = vpop.f32.mrb[0].mxu0
    %v485 = vadd.f32 %v442, %v484
    %v486 = vpop.f32.mrb[0].mxu0
    %v487 = vpop.f32.mrb[0].mxu0
    %v488 = vpop.f32.mrb[0].mxu0
    %489 = vdwg.mxu0
    %v490 = vsel %vm255, %v485, -inf
    %491 = vmax.xlane.f32.xlu0 %v490
    %v492 = vpop.xlane.xlu0 %491
    %v493 = vsub.f32 %v485, %v492
    %v494 = vmul.f32 %v493, 1.442695
    %v495 = vpow.pop %v494
    %v496 = vsel %vm255, %v495, 0.0
    %497 = vadd.xlane.f32.xlu0 %v496
    %v498 = vpop.xlane.xlu0 %497
    %v499 = vrcp.pop %v498
    %v500 = vmul.f32 %v495, %v499
    %v501 = vpack.c.bf16 %v500, %v500
    %502 = vrot.lane.b32.xlu0 %v432, 64
    %v503 = vpop.permute.xlu0 %502
    %v505 = vsel %vm255, %v501, 0
    %v508 = vsel %vm273, %v503, 0
    %510 = vmatprep.subr.bf16.mxu0 0
    %511 = vmatpush1.bf16.msra.mxu0 %v508
    %512 = vmatprep.subr.bf16.mxu0 0
    %513 = vmatpush1.bf16.msra.mxu0 0
    %514 = vmatprep.subr.bf16.mxu0 0
    %515 = vmatpush1.bf16.msra.mxu0 0
    %516 = vmatprep.subr.bf16.mxu0 0
    %517 = vmatpush1.bf16.msra.mxu0 0
    %518 = vmatprep.subr.bf16.mxu0 0
    %519 = vmatpush1.bf16.msra.mxu0 0
    %520 = vmatprep.subr.bf16.mxu0 0
    %521 = vmatpush1.bf16.msra.mxu0 0
    %522 = vmatprep.subr.bf16.mxu0 0
    %523 = vmatpush1.bf16.msra.mxu0 0
    %524 = vmatprep.subr.bf16.mxu0 0
    %525 = vmatpush1.bf16.msra.mxu0 0
    %526 = vmatprep.subr.bf16.mxu0 0
    %527 = vmatpush1.bf16.msra.mxu0 0
    %528 = vmatprep.subr.bf16.mxu0 0
    %529 = vmatpush1.bf16.msra.mxu0 0
    %530 = vmatprep.subr.bf16.mxu0 0
    %531 = vmatpush1.bf16.msra.mxu0 0
    %532 = vmatprep.subr.bf16.mxu0 0
    %533 = vmatpush1.bf16.msra.mxu0 0
    %534 = vmatprep.subr.bf16.mxu0 0
    %535 = vmatpush1.bf16.msra.mxu0 0
    %536 = vmatprep.subr.bf16.mxu0 0
    %537 = vmatpush1.bf16.msra.mxu0 0
    %538 = vmatprep.subr.bf16.mxu0 0
    %539 = vmatpush1.bf16.msra.mxu0 0
    %540 = vmatprep.subr.bf16.mxu0 0
    %541 = vmatpush1.bf16.msra.mxu0 0
    %542 = vmatprep.mubr.bf16.mxu0 0
    %543 = vmatmul.mubr.bf16.gmra.mrb[0].mxu0 %v505
    %v544 = vpop.f32.mrb[0].mxu0
    %v545 = vadd.f32 0.0, %v544
    %v546 = vpop.f32.mrb[0].mxu0
    %v547 = vpop.f32.mrb[0].mxu0
    %v548 = vpop.f32.mrb[0].mxu0
    %549 = vdwg.mxu0
    %550 = vrot.lane.b32.xlu0 %v432, 112
    %v551 = vpop.permute.xlu0 %550
    %552 = vrot.lane.b32.xlu0 %v432, 80
    %v553 = vpop.permute.xlu0 %552
    %v555 = vsel %vm208, %v551, 0
    %v558 = vsel %vm208, %v553, 0
    %560 = vmatprep.subr.bf16.mxu0 0
    %561 = vmatpush1.bf16.xpose.msra.mxu0 %v558
    %562 = vmatprep.subr.bf16.mxu0 0
    %563 = vmatpush1.bf16.xpose.msra.mxu0 0
    %564 = vmatprep.subr.bf16.mxu0 0
    %565 = vmatpush1.bf16.xpose.msra.mxu0 0
    %566 = vmatprep.subr.bf16.mxu0 0
    %567 = vmatpush1.bf16.xpose.msra.mxu0 0
    %568 = vmatprep.subr.bf16.mxu0 0
    %569 = vmatpush1.bf16.xpose.msra.mxu0 0
    %570 = vmatprep.subr.bf16.mxu0 0
    %571 = vmatpush1.bf16.xpose.msra.mxu0 0
    %572 = vmatprep.subr.bf16.mxu0 0
    %573 = vmatpush1.bf16.xpose.msra.mxu0 0
    %574 = vmatprep.subr.bf16.mxu0 0
    %575 = vmatpush1.bf16.xpose.msra.mxu0 0
    %576 = vmatprep.subr.bf16.mxu0 0
    %577 = vmatpush1.bf16.xpose.msra.mxu0 0
    %578 = vmatprep.subr.bf16.mxu0 0
    %579 = vmatpush1.bf16.xpose.msra.mxu0 0
    %580 = vmatprep.subr.bf16.mxu0 0
    %581 = vmatpush1.bf16.xpose.msra.mxu0 0
    %582 = vmatprep.subr.bf16.mxu0 0
    %583 = vmatpush1.bf16.xpose.msra.mxu0 0
    %584 = vmatprep.subr.bf16.mxu0 0
    %585 = vmatpush1.bf16.xpose.msra.mxu0 0
    %586 = vmatprep.subr.bf16.mxu0 0
    %587 = vmatpush1.bf16.xpose.msra.mxu0 0
    %588 = vmatprep.subr.bf16.mxu0 0
    %589 = vmatpush1.bf16.xpose.msra.mxu0 0
    %590 = vmatprep.subr.bf16.mxu0 0
    %591 = vmatpush1.bf16.xpose.msra.mxu0 0
    %592 = vmatprep.mubr.bf16.mxu0 0
    %593 = vmatmul.mubr.bf16.gmra.mrb[0].mxu0 %v555
    %v594 = vpop.f32.mrb[0].mxu0
    %v595 = vadd.f32 %v442, %v594
    %v596 = vpop.f32.mrb[0].mxu0
    %v597 = vpop.f32.mrb[0].mxu0
    %v598 = vpop.f32.mrb[0].mxu0
    %599 = vdwg.mxu0
    %v600 = vsel %vm255, %v595, -inf
    %601 = vmax.xlane.f32.xlu0 %v600
    %v602 = vpop.xlane.xlu0 %601
    %v603 = vsub.f32 %v595, %v602
    %v604 = vmul.f32 %v603, 1.442695
    %v605 = vpow.pop %v604
    %v606 = vsel %vm255, %v605, 0.0
    %607 = vadd.xlane.f32.xlu0 %v606
    %v608 = vpop.xlane.xlu0 %607
    %v609 = vrcp.pop %v608
    %v610 = vmul.f32 %v605, %v609
    %v611 = vpack.c.bf16 %v610, %v610
    %612 = vrot.lane.b32.xlu0 %v432, 48
    %v613 = vpop.permute.xlu0 %612
    %v615 = vsel %vm255, %v611, 0
    %v618 = vsel %vm273, %v613, 0
    %620 = vmatprep.subr.bf16.mxu0 0
    %621 = vmatpush1.bf16.msra.mxu0 %v618
    %622 = vmatprep.subr.bf16.mxu0 0
    %623 = vmatpush1.bf16.msra.mxu0 0
    %624 = vmatprep.subr.bf16.mxu0 0
    %625 = vmatpush1.bf16.msra.mxu0 0
    %626 = vmatprep.subr.bf16.mxu0 0
    %627 = vmatpush1.bf16.msra.mxu0 0
    %628 = vmatprep.subr.bf16.mxu0 0
    %629 = vmatpush1.bf16.msra.mxu0 0
    %630 = vmatprep.subr.bf16.mxu0 0
    %631 = vmatpush1.bf16.msra.mxu0 0
    %632 = vmatprep.subr.bf16.mxu0 0
    %633 = vmatpush1.bf16.msra.mxu0 0
    %634 = vmatprep.subr.bf16.mxu0 0
    %635 = vmatpush1.bf16.msra.mxu0 0
    %636 = vmatprep.subr.bf16.mxu0 0
    %637 = vmatpush1.bf16.msra.mxu0 0
    %638 = vmatprep.subr.bf16.mxu0 0
    %639 = vmatpush1.bf16.msra.mxu0 0
    %640 = vmatprep.subr.bf16.mxu0 0
    %641 = vmatpush1.bf16.msra.mxu0 0
    %642 = vmatprep.subr.bf16.mxu0 0
    %643 = vmatpush1.bf16.msra.mxu0 0
    %644 = vmatprep.subr.bf16.mxu0 0
    %645 = vmatpush1.bf16.msra.mxu0 0
    %646 = vmatprep.subr.bf16.mxu0 0
    %647 = vmatpush1.bf16.msra.mxu0 0
    %648 = vmatprep.subr.bf16.mxu0 0
    %649 = vmatpush1.bf16.msra.mxu0 0
    %650 = vmatprep.subr.bf16.mxu0 0
    %651 = vmatpush1.bf16.msra.mxu0 0
    %652 = vmatprep.mubr.bf16.mxu0 0
    %653 = vmatmul.mubr.bf16.gmra.mrb[0].mxu0 %v615
    %v654 = vpop.f32.mrb[0].mxu0
    %v655 = vadd.f32 0.0, %v654
    %v656 = vpop.f32.mrb[0].mxu0
    %v657 = vpop.f32.mrb[0].mxu0
    %v658 = vpop.f32.mrb[0].mxu0
    %659 = vdwg.mxu0
    %661 = vrot.lane.b32.xlu0 %v655, 16
    %v662 = vpop.permute.xlu0 %661
    %v664 = vsel %vm208, %v545, %v662
    %v665 = vpack.c.bf16 %v664, %v431
    %v666 = vlaneseq
    %v667 = vshrl.u32 %v666, 7
    %v668 = vsub.s32 1, %v667
    %v669 = vrot.slane %v30, %v668
    %670 = vrot.lane.b32.xlu0 %v145, 32
    %v671 = vpop.permute.xlu0 %670
    %672 = vrot.lane.b32.xlu0 %v146, 32
    %v673 = vpop.permute.xlu0 %672
    %v677 = vsel %vm149, %v665, 0
    %679 = vmatprep.subr.bf16.mxu0 0
    %680 = vmatpush1.bf16.msra.mxu0 %v671
    %681 = vmatprep.subr.bf16.mxu0 0
    %682 = vmatpush1.bf16.msra.mxu0 %v673
    %683 = vmatprep.subr.bf16.mxu0 0
    %684 = vmatpush1.bf16.msra.mxu0 0
    %685 = vmatprep.subr.bf16.mxu0 0
    %686 = vmatpush1.bf16.msra.mxu0 0
    %687 = vmatprep.subr.bf16.mxu0 0
    %688 = vmatpush1.bf16.msra.mxu0 0
    %689 = vmatprep.subr.bf16.mxu0 0
    %690 = vmatpush1.bf16.msra.mxu0 0
    %691 = vmatprep.subr.bf16.mxu0 0
    %692 = vmatpush1.bf16.msra.mxu0 0
    %693 = vmatprep.subr.bf16.mxu0 0
    %694 = vmatpush1.bf16.msra.mxu0 0
    %695 = vmatprep.subr.bf16.mxu0 0
    %696 = vmatpush1.bf16.msra.mxu0 0
    %697 = vmatprep.subr.bf16.mxu0 0
    %698 = vmatpush1.bf16.msra.mxu0 0
    %699 = vmatprep.subr.bf16.mxu0 0
    %700 = vmatpush1.bf16.msra.mxu0 0
    %701 = vmatprep.subr.bf16.mxu0 0
    %702 = vmatpush1.bf16.msra.mxu0 0
    %703 = vmatprep.subr.bf16.mxu0 0
    %704 = vmatpush1.bf16.msra.mxu0 0
    %705 = vmatprep.subr.bf16.mxu0 0
    %706 = vmatpush1.bf16.msra.mxu0 0
    %707 = vmatprep.subr.bf16.mxu0 0
    %708 = vmatpush1.bf16.msra.mxu0 0
    %709 = vmatprep.subr.bf16.mxu0 0
    %710 = vmatpush1.bf16.msra.mxu0 0
    %711 = vmatprep.mubr.bf16.mxu0 0
    %712 = vmatmul.mubr.bf16.gmra.mrb[0].mxu0 %v677
    %v713 = vpop.f32.mrb[0].mxu0
    %v714 = vadd.f32 %v669, %v713
    %v715 = vpop.f32.mrb[0].mxu0
    %v716 = vpop.f32.mrb[0].mxu0
    %v717 = vadd.f32 %v669, %v716
    %v718 = vpop.f32.mrb[0].mxu0
    %719 = vdwg.mxu0
    %v720 = vadd.f32 %v126, %v714
    %v721 = vadd.f32 %v129, %v717
    %v722 = vsel %vm149, %v720, 0.0
    %723 = vadd.xlane.f32.xlu0 %v722
    %v724 = vpop.xlane.xlu0 %723
    %v725 = vsel %vm149, %v721, 0.0
    %726 = vadd.xlane.f32.xlu0 %v725
    %v727 = vpop.xlane.xlu0 %726
    %v728 = vrcp.pop 32.0
    %v729 = vmul.f32 %v724, %v728
    %v730 = vmul.f32 %v727, %v728
    %v731 = vsub.f32 %v720, %v729
    %v732 = vsub.f32 %v721, %v730
    %v733 = vmul.f32 %v731, %v731
    %v734 = vmul.f32 %v732, %v732
    %v735 = vsel %vm149, %v733, 0.0
    %736 = vadd.xlane.f32.xlu0 %v735
    %v737 = vpop.xlane.xlu0 %736
    %v738 = vsel %vm149, %v734, 0.0
    %739 = vadd.xlane.f32.xlu0 %v738
    %v740 = vpop.xlane.xlu0 %739
    %v741 = vmul.f32 %v737, %v728
    %v742 = vmul.f32 %v740, %v728
    %v743 = vadd.f32 %v741, 1e-05
    %v744 = vadd.f32 %v742, 1e-05
    %v745 = vrsqrt.pop %v743
    %v746 = vrsqrt.pop %v744
    %v747 = vmul.f32 %v731, %v745
    %v748 = vmul.f32 %v732, %v746
    %v749 = vlaneseq
    %v750 = vshrl.u32 %v749, 7
    %v751 = vsub.s32 2, %v750
    %v752 = vrot.slane %v30, %v751
    %v753 = vmul.f32 %v747, %v752
    %v754 = vmul.f32 %v748, %v752
    %v755 = vlaneseq
    %v756 = vshrl.u32 %v755, 7
    %v757 = vsub.s32 3, %v756
    %v758 = vrot.slane %v30, %v757
    %v759 = vadd.f32 %v753, %v758
    %v760 = vadd.f32 %v754, %v758
    %v761 = vpack.c.bf16 %v760, %v759
    %v762 = vld [vmem:[%s4] sm:$0xf]
    %v763 = vld [vmem:[%s4 + $0x4] sm:$0xf]
    %v764 = vld [vmem:[%s4 + $0x8] sm:$0xf]
    %v765 = vld [vmem:[%s4 + $0xc] sm:$0xf]
    %v766 = vlaneseq
    %v767 = vshrl.u32 %v766, 7
    %v768 = vsub.s32 4, %v767
    %v769 = vrot.slane %v30, %v768
    %v774 = vunpack.c.l.b16 %v762
    %v775 = vunpack.c.l.b16 %v763
    %v776 = vunpack.c.l.b16 %v764
    %v777 = vunpack.c.l.b16 %v765
    %v778 = vpack.c.b16 %v775, %v774
    %v779 = vpack.c.b16 %v777, %v776
    %v783 = vsel %vm149, %v761, 0
    %785 = vmatprep.subr.bf16.mxu0 0
    %786 = vmatpush1.bf16.msra.mxu0 %v778
    %787 = vmatprep.subr.bf16.mxu0 0
    %788 = vmatpush1.bf16.msra.mxu0 %v779
    %789 = vmatprep.subr.bf16.mxu0 0
    %790 = vmatpush1.bf16.msra.mxu0 0
    %791 = vmatprep.subr.bf16.mxu0 0
    %792 = vmatpush1.bf16.msra.mxu0 0
    %793 = vmatprep.subr.bf16.mxu0 0
    %794 = vmatpush1.bf16.msra.mxu0 0
    %795 = vmatprep.subr.bf16.mxu0 0
    %796 = vmatpush1.bf16.msra.mxu0 0
    %797 = vmatprep.subr.bf16.mxu0 0
    %798 = vmatpush1.bf16.msra.mxu0 0
    %799 = vmatprep.subr.bf16.mxu0 0
    %800 = vmatpush1.bf16.msra.mxu0 0
    %801 = vmatprep.subr.bf16.mxu0 0
    %802 = vmatpush1.bf16.msra.mxu0 0
    %803 = vmatprep.subr.bf16.mxu0 0
    %804 = vmatpush1.bf16.msra.mxu0 0
    %805 = vmatprep.subr.bf16.mxu0 0
    %806 = vmatpush1.bf16.msra.mxu0 0
    %807 = vmatprep.subr.bf16.mxu0 0
    %808 = vmatpush1.bf16.msra.mxu0 0
    %809 = vmatprep.subr.bf16.mxu0 0
    %810 = vmatpush1.bf16.msra.mxu0 0
    %811 = vmatprep.subr.bf16.mxu0 0
    %812 = vmatpush1.bf16.msra.mxu0 0
    %813 = vmatprep.subr.bf16.mxu0 0
    %814 = vmatpush1.bf16.msra.mxu0 0
    %815 = vmatprep.subr.bf16.mxu0 0
    %816 = vmatpush1.bf16.msra.mxu0 0
    %817 = vmatprep.mubr.bf16.mxu0 0
    %818 = vmatmul.mubr.bf16.gmra.mrb[0].mxu0 %v783
    %v819 = vpop.f32.mrb[0].mxu0
    %v820 = vadd.f32 %v769, %v819
    %v821 = vpop.f32.mrb[0].mxu0
    %v822 = vpop.f32.mrb[0].mxu0
    %v823 = vadd.f32 %v769, %v822
    %v824 = vpop.f32.mrb[0].mxu0
    %825 = vdwg.mxu0
    %v826 = vmul.f32 %v820, 0.5
    %v827 = vmul.f32 %v823, 0.5
    %v828 = vmul.f32 %v820, 0.044715
    %v829 = vmul.f32 %v823, 0.044715
    %v830 = vmul.f32 %v828, %v820
    %v831 = vmul.f32 %v829, %v823
    %v832 = vmul.f32 %v830, %v820
    %v833 = vmul.f32 %v831, %v823
    %v834 = vadd.f32 %v820, %v832
    %v835 = vadd.f32 %v823, %v833
    %v836 = vmul.f32 %v834, 0.7978846
    %v837 = vmul.f32 %v835, 0.7978846
    %v838 = vtanh.pop %v836
    %v839 = vtanh.pop %v837
    %v840 = vadd.f32 %v838, 1.0
    %v841 = vadd.f32 %v839, 1.0
    %v842 = vmul.f32 %v826, %v840
    %v843 = vmul.f32 %v827, %v841
    %v844 = vpack.c.bf16 %v843, %v842
    %v845 = vld [vmem:[%s5] sm:$0xf]
    %v846 = vld [vmem:[%s5 + $0x4] sm:$0xf]
    %v847 = vld [vmem:[%s5 + $0x8] sm:$0xf]
    %v848 = vld [vmem:[%s5 + $0xc] sm:$0xf]
    %v849 = vld [vmem:[%s5 + $0x10] sm:$0xf]
    %v850 = vld [vmem:[%s5 + $0x14] sm:$0xf]
    %v851 = vld [vmem:[%s5 + $0x18] sm:$0xf]
    %v852 = vld [vmem:[%s5 + $0x1c] sm:$0xf]
    %v853 = vlaneseq
    %v854 = vshrl.u32 %v853, 7
    %v855 = vsub.s32 5, %v854
    %v856 = vrot.slane %v30, %v855
    %v865 = vunpack.c.l.b16 %v845
    %v866 = vunpack.c.l.b16 %v846
    %v867 = vunpack.c.l.b16 %v847
    %v868 = vunpack.c.l.b16 %v848
    %v869 = vunpack.c.l.b16 %v849
    %v870 = vunpack.c.l.b16 %v850
    %v871 = vunpack.c.l.b16 %v851
    %v872 = vunpack.c.l.b16 %v852
    %v873 = vpack.c.b16 %v866, %v865
    %v874 = vpack.c.b16 %v868, %v867
    %v875 = vpack.c.b16 %v870, %v869
    %v876 = vpack.c.b16 %v872, %v871
    %v882 = vsel %vm87, %v844, 0
    %884 = vmatprep.subr.bf16.mxu0 0
    %885 = vmatpush1.bf16.msra.mxu0 %v873
    %886 = vmatprep.subr.bf16.mxu0 0
    %887 = vmatpush1.bf16.msra.mxu0 %v874
    %888 = vmatprep.subr.bf16.mxu0 0
    %889 = vmatpush1.bf16.msra.mxu0 %v875
    %890 = vmatprep.subr.bf16.mxu0 0
    %891 = vmatpush1.bf16.msra.mxu0 %v876
    %892 = vmatprep.subr.bf16.mxu0 0
    %893 = vmatpush1.bf16.msra.mxu0 0
    %894 = vmatprep.subr.bf16.mxu0 0
    %895 = vmatpush1.bf16.msra.mxu0 0
    %896 = vmatprep.subr.bf16.mxu0 0
    %897 = vmatpush1.bf16.msra.mxu0 0
    %898 = vmatprep.subr.bf16.mxu0 0
    %899 = vmatpush1.bf16.msra.mxu0 0
    %900 = vmatprep.subr.bf16.mxu0 0
    %901 = vmatpush1.bf16.msra.mxu0 0
    %902 = vmatprep.subr.bf16.mxu0 0
    %903 = vmatpush1.bf16.msra.mxu0 0
    %904 = vmatprep.subr.bf16.mxu0 0
    %905 = vmatpush1.bf16.msra.mxu0 0
    %906 = vmatprep.subr.bf16.mxu0 0
    %907 = vmatpush1.bf16.msra.mxu0 0
    %908 = vmatprep.subr.bf16.mxu0 0
    %909 = vmatpush1.bf16.msra.mxu0 0
    %910 = vmatprep.subr.bf16.mxu0 0
    %911 = vmatpush1.bf16.msra.mxu0 0
    %912 = vmatprep.subr.bf16.mxu0 0
    %913 = vmatpush1.bf16.msra.mxu0 0
    %914 = vmatprep.subr.bf16.mxu0 0
    %915 = vmatpush1.bf16.msra.mxu0 0
    %916 = vmatprep.mubr.bf16.mxu0 0
    %917 = vmatmul.mubr.bf16.gmra.mrb[0].mxu0 %v882
    %v918 = vpop.f32.mrb[0].mxu0
    %v919 = vadd.f32 %v856, %v918
    %v920 = vpop.f32.mrb[0].mxu0
    %v921 = vpop.f32.mrb[0].mxu0
    %v922 = vadd.f32 %v856, %v921
    %v923 = vpop.f32.mrb[0].mxu0
    %924 = vdwg.mxu0
    %v925 = vadd.f32 %v759, %v919
    %v926 = vadd.f32 %v760, %v922
    %v927 = vsel %vm149, %v925, 0.0
    %928 = vadd.xlane.f32.xlu0 %v927
    %v929 = vpop.xlane.xlu0 %928
    %v930 = vsel %vm149, %v926, 0.0
    %931 = vadd.xlane.f32.xlu0 %v930
    %v932 = vpop.xlane.xlu0 %931
    %v933 = vmul.f32 %v929, %v728
    %v934 = vmul.f32 %v932, %v728
    %v935 = vsub.f32 %v925, %v933
    %v936 = vsub.f32 %v926, %v934
    %v937 = vmul.f32 %v935, %v935
    %v938 = vmul.f32 %v936, %v936
    %v939 = vsel %vm149, %v937, 0.0
    %940 = vadd.xlane.f32.xlu0 %v939
    %v941 = vpop.xlane.xlu0 %940
    %v942 = vsel %vm149, %v938, 0.0
    %943 = vadd.xlane.f32.xlu0 %v942
    %v944 = vpop.xlane.xlu0 %943
    %v945 = vmul.f32 %v941, %v728
    %v946 = vmul.f32 %v944, %v728
    %v947 = vadd.f32 %v945, 1e-05
    %v948 = vadd.f32 %v946, 1e-05
    %v949 = vrsqrt.pop %v947
    %v950 = vrsqrt.pop %v948
    %v951 = vmul.f32 %v935, %v949
    %v952 = vmul.f32 %v936, %v950
    %v953 = vlaneseq
    %v954 = vshrl.u32 %v953, 7
    %v955 = vsub.s32 6, %v954
    %v956 = vrot.slane %v30, %v955
    %v957 = vmul.f32 %v951, %v956
    %v958 = vmul.f32 %v952, %v956
    %v959 = vlaneseq
    %v960 = vshrl.u32 %v959, 7
    %v961 = vsub.s32 7, %v960
    %v962 = vrot.slane %v30, %v961
    %v963 = vadd.f32 %v957, %v962
    %v964 = vadd.f32 %v958, %v962
    %v966 = vrot.slane %v964, 7
    %vm968 = vcmask 1040384
    %v969 = vsel %vm968, %v963, %v966
    %970 = vrot.lane.b32.xlu0 %v28, 16
    %v971 = vpop.permute.xlu0 %970
    %v973 = vsel %vm149, %v969, %v971
    %vm974 = vcmask 269312
    %v975 = vsel %vm974, %v973, 1.0
    %vm976 = vcmask 277504
    %v978 = vsel %vm976, %v975, 0
    %v981 = vsel %vm976, %v31, 0
    %983 = vmatprep.subr.mxu0 0.0
    %984 = vmatpush1.xpose.msra.mxu0 %v981
    %985 = vmatprep.subr.mxu0 0.0
    %986 = vmatpush1.xpose.msra.mxu0 0.0
    %987 = vmatprep.subr.mxu0 0.0
    %988 = vmatpush1.xpose.msra.mxu0 0.0
    %989 = vmatprep.subr.mxu0 0.0
    %990 = vmatpush1.xpose.msra.mxu0 0.0
    %991 = vmatprep.subr.mxu0 0.0
    %992 = vmatpush1.xpose.msra.mxu0 0.0
    %993 = vmatprep.subr.mxu0 0.0
    %994 = vmatpush1.xpose.msra.mxu0 0.0
    %995 = vmatprep.subr.mxu0 0.0
    %996 = vmatpush1.xpose.msra.mxu0 0.0
    %997 = vmatprep.subr.mxu0 0.0
    %998 = vmatpush1.xpose.msra.mxu0 0.0
    %999 = vmatprep.subr.mxu0 0.0
    %1000 = vmatpush1.xpose.msra.mxu0 0.0
    %1001 = vmatprep.subr.mxu0 0.0
    %1002 = vmatpush1.xpose.msra.mxu0 0.0
    %1003 = vmatprep.subr.mxu0 0.0
    %1004 = vmatpush1.xpose.msra.mxu0 0.0
    %1005 = vmatprep.subr.mxu0 0.0
    %1006 = vmatpush1.xpose.msra.mxu0 0.0
    %1007 = vmatprep.subr.mxu0 0.0
    %1008 = vmatpush1.xpose.msra.mxu0 0.0
    %1009 = vmatprep.subr.mxu0 0.0
    %1010 = vmatpush1.xpose.msra.mxu0 0.0
    %1011 = vmatprep.subr.mxu0 0.0
    %1012 = vmatpush1.xpose.msra.mxu0 0.0
    %1013 = vmatprep.subr.mxu0 0.0
    %1014 = vmatpush1.xpose.msra.mxu0 0.0
    %1015 = vmatprep.subr.mxu0 0.0
    %1016 = vmatpush1.xpose.msra.mxu0 0.0
    %1017 = vmatprep.subr.mxu0 0.0
    %1018 = vmatpush1.xpose.msra.mxu0 0.0
    %1019 = vmatprep.subr.mxu0 0.0
    %1020 = vmatpush1.xpose.msra.mxu0 0.0
    %1021 = vmatprep.subr.mxu0 0.0
    %1022 = vmatpush1.xpose.msra.mxu0 0.0
    %1023 = vmatprep.subr.mxu0 0.0
    %1024 = vmatpush1.xpose.msra.mxu0 0.0
    %1025 = vmatprep.subr.mxu0 0.0
    %1026 = vmatpush1.xpose.msra.mxu0 0.0
    %1027 = vmatprep.subr.mxu0 0.0
    %1028 = vmatpush1.xpose.msra.mxu0 0.0
    %1029 = vmatprep.subr.mxu0 0.0
    %1030 = vmatpush1.xpose.msra.mxu0 0.0
    %1031 = vmatprep.subr.mxu0 0.0
    %1032 = vmatpush1.xpose.msra.mxu0 0.0
    %1033 = vmatprep.subr.mxu0 0.0
    %1034 = vmatpush1.xpose.msra.mxu0 0.0
    %1035 = vmatprep.subr.mxu0 0.0
    %1036 = vmatpush1.xpose.msra.mxu0 0.0
    %1037 = vmatprep.subr.mxu0 0.0
    %1038 = vmatpush1.xpose.msra.mxu0 0.0
    %1039 = vmatprep.subr.mxu0 0.0
    %1040 = vmatpush1.xpose.msra.mxu0 0.0
    %1041 = vmatprep.subr.mxu0 0.0
    %1042 = vmatpush1.xpose.msra.mxu0 0.0
    %1043 = vmatprep.subr.mxu0 0.0
    %1044 = vmatpush1.xpose.msra.mxu0 0.0
    %1045 = vmatprep.subr.mxu0 0.0
    %1046 = vmatpush1.xpose.msra.mxu0 0.0
    %1047 = vmatprep.mubr.f32.mxu0 0.0
    %1048 = vmatmul.mubr.f32.gmra.mrb[0].mxu0 %v978
    %v1049 = vpop.f32.mrb[0].mxu0
    %v1050 = vadd.f32 0.0, %v1049
    %v1051 = vpop.f32.mrb[0].mxu0
    %1052 = vdwg.mxu0
    %vm1053 = vcmask 15360
    %v1054 = vsel %vm1053, %v1050, 0.0
    %vm1055 = vcmask 9216
    %v1056 = vsel %vm1055, %v1050, -inf
    %1057 = vmax.xlane.f32.xlu0 %v1056
    %v1058 = vpop.xlane.xlu0 %1057
    %v1059 = vsub.f32 %v1050, %v1058
    %v1060 = vmul.f32 %v1059, 1.442695
    %v1061 = vpow.pop %v1060
    %v1062 = vsel %vm1055, %v1061, 0.0
    %1063 = vadd.xlane.f32.xlu0 %v1062
    %v1064 = vpop.xlane.xlu0 %1063
    %v1065 = vlog2.pop %v1064
    %v1066 = vmul.f32 %v1065, 0.6931472
    %v1067 = vadd.f32 %v1058, %v1066
    %1068 = vrot.lane.b32.xlu0 %v28, 104
    %v1069 = vpop.permute.xlu0 %1068
    %v1071 = vmul.f32 %v1050, %v1069
    %v1072 = vsel %vm1055, %v1071, 0.0
    %1073 = vadd.xlane.f32.xlu0 %v1072
    %v1074 = vpop.xlane.xlu0 %1073
    %v1075 = vsub.f32 %v1067, %v1074
    %vm1076 = vcmask 1041408
    %v1077 = vsel %vm1076, %v1075, 0.0
    %v1078 = vrot.slane %v1077, 4
    %v1079 = vadd.f32 %v1077, %v1078
    %v1080 = vrot.slane %v1079, 2
    %v1081 = vadd.f32 %v1079, %v1080
    %v1082 = vrot.slane %v1081, 1
    %v1083 = vadd.f32 %v1081, %v1082
    %v1084 = vrcp.pop 2.0
    %v1085 = vmul.f32 %v1083, %v1084
    %vm1086 = vcmask 7168
    %v1087 = vsel %vm1086, %v1085, 0.0
    %v1089 = vrot.slane %v1087, 6
    %v1091 = vsel %vm1076, %v1054, %v1089
    %vm1092 = vcmask 1042432
    %v1093 = vsel %vm1092, %v1091, 0.0
    %1094 = vst [vmem:[#allocation2] sm:$0xff] %v1093
    // Predicated region
    $region30: #{tpu_custom_call.1} parent=1 // pred_check
      _
    $region31: #{tpu_custom_call.1} parent=1 // pred_check_branch
      %1096 = sbr.rel (0) target = $region33
    $region32: #{tpu_custom_call.1} parent=1 // pred_region
      %s1098 = ssub.s32 128, 128
      %1099 = vsyncadd [#allocation3], %s1098
      %s1101 = sshll.u32 [#allocation2], 4
      %s1102 = int_to_ptr.vmem [resolvable:$true] %s1101
      %1104 = dma.vmem_to_hbm [thread:$0]  %s1102, 128, %s7, [#allocation3]
    $region33: #{tpu_custom_call.1} parent=1 // pred_fallthru
      _
    // Predicated region
    $region34: #{tpu_custom_call.1} parent=1 // pred_check
      _
    $region35: #{tpu_custom_call.1} parent=1 // pred_check_branch
      %1106 = sbr.rel (0) target = $region37
    $region36: #{tpu_custom_call.1} parent=1 // pred_region
      %1107 = dma.done [#allocation3], 128
    $region37: #{tpu_custom_call.1} parent=1 // pred_fallthru
      _
    %1108 = vsyncpa [#allocation3], 1

</llo_original>
